<compile_context>
chip_gen: v7x
topology: tpu7x:2x2x1
jax: 0.10.0
libtpu: 0.0.40
codegen_flags: <defaults>
</compile_context>

<pallas_src>
import functools

import jax
import jax.numpy as jnp
from jax.experimental import pallas as pl
from jax.experimental.pallas import tpu as pltpu

LANE = 128
SUBLANE = 8


def _round_up(x, m):
    return (x + m - 1) // m * m


def gru_fc_kernel(x_ref, wih_ref, bfold_ref, whh_ref, bhn_ref, wfc_ref,
                  bfc_ref, out_ref, gx_ref):
    # x_ref    : (T*Bp, I)   time-major input rows (row = t*Bp + b)
    # wih_ref  : (I, 3*Hp)   input->gates weights, gate blocks 128-aligned
    # bfold_ref: (1, 3*Hp)   (b_ih+b_hh) for r/z gates, b_ih for n gate
    # whh_ref  : (Hp, 3*Hp)  hidden->gates weights
    # bhn_ref  : (1, Hp)     b_hh for the n gate (must stay inside r*(.))
    # wfc_ref  : (Hp, Op)    FC weights (lane-dense, padded)
    # bfc_ref  : (1, Op)
    # out_ref  : (Bp, Op)
    # gx_ref   : (T*Bp, 3*Hp) VMEM scratch for the hoisted input projection
    Bp = out_ref.shape[0]
    TB, _ = x_ref.shape
    T = TB // Bp
    Hp = whh_ref.shape[0]

    # Hoisted input projection: one matmul over all T*Bp rows (no serial
    # dependence on h), result parked in VMEM scratch.
    gx_ref[...] = (jnp.dot(x_ref[...], wih_ref[...],
                           preferred_element_type=jnp.float32)
                   + bfold_ref[...])

    bhn = jnp.broadcast_to(bhn_ref[...], (Bp, Hp))          # hoisted broadcast

    h = jnp.zeros((Bp, Hp), jnp.float32)
    # T is small & static -> full unroll with static sublane-aligned slices.
    for t in range(T):
        gx = gx_ref[t * Bp:(t + 1) * Bp, :]                 # (Bp, 3Hp)
        gh = jnp.dot(h, whh_ref[...],
                     preferred_element_type=jnp.float32)    # (Bp, 3Hp)
        # r and z in one fused EUP call: sigmoid(x) = 0.5*tanh(0.5*x) + 0.5
        rz = 0.5 * jnp.tanh(0.5 * (gx[:, :2 * Hp] + gh[:, :2 * Hp])) + 0.5
        r = rz[:, :Hp]
        z = rz[:, Hp:]
        n = jnp.tanh(gx[:, 2 * Hp:] + r * (gh[:, 2 * Hp:] + bhn))
        h = n + z * (h - n)                                 # == (1-z)*n + z*h

    out_ref[...] = (jnp.dot(h, wfc_ref[...],
                            preferred_element_type=jnp.float32)
                    + bfc_ref[...])


def prepare_params(params):
    """One-time padding/folding of GRU+FC params (called outside the hot path).

    Returns (prepped_arrays_dict, (hidden_size, output_size))."""
    H = params["w_hh"].shape[0]
    O = params["w_fc"].shape[1]
    Hp = _round_up(H, LANE)
    Op = _round_up(O, LANE)

    def split_pad_gate_cols(w):
        # (rows, 3H) -> (rows, 3Hp) with each gate block 128-lane aligned.
        parts = [jnp.pad(w[:, g * H:(g + 1) * H], ((0, 0), (0, Hp - H)))
                 for g in range(3)]
        return jnp.concatenate(parts, axis=1)

    w_ih_p = split_pad_gate_cols(params["w_ih"])                    # (I, 3Hp)
    w_hh_p = jnp.pad(split_pad_gate_cols(params["w_hh"]),
                     ((0, Hp - H), (0, 0)))                         # (Hp, 3Hp)
    b_ih_p = split_pad_gate_cols(params["b_ih"])                    # (1, 3Hp)
    b_hh_p = split_pad_gate_cols(params["b_hh"])                    # (1, 3Hp)

    # Fold r/z biases (b_ih + b_hh) and b_ih_n into the projection; keep
    # b_hh_n separate (it must stay inside the r-multiplication).
    b_fold = jnp.concatenate(
        [b_ih_p[:, :2 * Hp] + b_hh_p[:, :2 * Hp],
         b_ih_p[:, 2 * Hp:]], axis=1)                               # (1, 3Hp)
    b_hn = b_hh_p[:, 2 * Hp:]                                       # (1, Hp)

    w_fc_p = jnp.pad(params["w_fc"], ((0, Hp - H), (0, Op - O)))    # (Hp, Op)
    b_fc_p = jnp.pad(params["b_fc"], ((0, 0), (0, Op - O)))         # (1, Op)

    prepped = {"w_ih": w_ih_p, "b_fold": b_fold, "w_hh": w_hh_p,
               "b_hn": b_hn, "w_fc": w_fc_p, "b_fc": b_fc_p}
    return prepped, (H, O)


@functools.partial(jax.jit, static_argnames=("out_size",))
def gru_net_forward(x_btI, prepped, out_size):
    """x_btI: (B, T, I) float32 (PyTorch batch_first). Returns (B, O)."""
    x = x_btI.astype(jnp.float32)
    B, T, I = x.shape
    Hp = prepped["w_hh"].shape[0]
    Op = prepped["w_fc"].shape[1]
    Bp = _round_up(max(B, SUBLANE), SUBLANE)

    # Time-major, batch padded to the 8-sublane tile, flattened to 2D rows
    # (row = t*Bp + b) so the kernel's per-step slice is a static aligned view.
    x_tb = jnp.pad(jnp.transpose(x, (1, 0, 2)),
                   ((0, 0), (0, Bp - B), (0, 0))).reshape(T * Bp, I)

    vmem = pl.BlockSpec(memory_space=pltpu.MemorySpace.VMEM)
    out_p = pl.pallas_call(
        gru_fc_kernel,
        out_shape=jax.ShapeDtypeStruct((Bp, Op), jnp.float32),
        in_specs=[vmem] * 7,
        out_specs=vmem,
        scratch_shapes=[pltpu.VMEM((T * Bp, 3 * Hp), jnp.float32)],
    )(x_tb, prepped["w_ih"], prepped["b_fold"], prepped["w_hh"],
      prepped["b_hn"], prepped["w_fc"], prepped["b_fc"])

    return out_p[:B, :out_size]


def init_params(key, input_size, hidden_size, output_size):
    """Deterministic init matching PyTorch shapes (weights stored transposed,
    gate order r, z, n along the 3H axis)."""
    ks = jax.random.split(key, 6)
    s = 1.0 / jnp.sqrt(hidden_size)
    u = lambda k, shape: jax.random.uniform(k, shape, jnp.float32, -s, s)
    return {
        "w_ih": u(ks[0], (input_size, 3 * hidden_size)),   # W_ih^T
        "w_hh": u(ks[1], (hidden_size, 3 * hidden_size)),  # W_hh^T
        "b_ih": u(ks[2], (1, 3 * hidden_size)),
        "b_hh": u(ks[3], (1, 3 * hidden_size)),
        "w_fc": u(ks[4], (hidden_size, output_size)),      # W_fc^T
        "b_fc": u(ks[5], (1, output_size)),
    }


def gru_net_reference(x_btI, params):
    """Pure-JAX reference of the PyTorch forward (for verification)."""
    B, T, _ = x_btI.shape
    H = params["w_hh"].shape[0]
    hp = "highest"
    h = jnp.zeros((B, H), jnp.float32)
    for t in range(T):
        x_t = x_btI[:, t, :]
        gx = jnp.dot(x_t, params["w_ih"], precision=hp) + params["b_ih"]
        gh = jnp.dot(h, params["w_hh"], precision=hp) + params["b_hh"]
        r = jax.nn.sigmoid(gx[:, :H] + gh[:, :H])
        z = jax.nn.sigmoid(gx[:, H:2 * H] + gh[:, H:2 * H])
        n = jnp.tanh(gx[:, 2 * H:] + r * gh[:, 2 * H:])
        h = (1.0 - z) * n + z * h
    return jnp.dot(h, params["w_fc"], precision=hp) + params["b_fc"]


if __name__ == "__main__":
    input_size, hidden_size, output_size = 10, 50, 10
    batch, seq = 2, 8

    key = jax.random.PRNGKey(0)
    k_x, k_p = jax.random.split(key)
    x = jax.random.normal(k_x, (batch, seq, input_size), jnp.float32)
    params = init_params(k_p, input_size, hidden_size, output_size)

    # One-time parameter prep (padding / bias folding) outside the hot path.
    prepped, (_, out_size) = prepare_params(params)

    out = gru_net_forward(x, prepped, out_size)
    out = jax.block_until_ready(out)

    ref = gru_net_reference(x, params)
    assert out.shape == (batch, output_size)
    assert jnp.allclose(out, ref, atol=1e-4, rtol=1e-4), "mismatch vs reference"

    print("KERNEL_OK")
</pallas_src>

<mosaic_0001>
module attributes {stable_mosaic.version = 11 : i64} {
  func.func @gru_fc_kernel(%arg0: memref<64x10xf32, #tpu.memory_space<vmem>>, %arg1: memref<10x384xf32, #tpu.memory_space<vmem>>, %arg2: memref<1x384xf32, #tpu.memory_space<vmem>>, %arg3: memref<128x384xf32, #tpu.memory_space<vmem>>, %arg4: memref<1x128xf32, #tpu.memory_space<vmem>>, %arg5: memref<128x128xf32, #tpu.memory_space<vmem>>, %arg6: memref<1x128xf32, #tpu.memory_space<vmem>>, %arg7: memref<8x128xf32, #tpu.memory_space<vmem>>, %arg8: memref<64x384xf32, #tpu.memory_space<vmem>>) attributes {dimension_semantics = [], scalar_prefetch = 0 : i64, scratch_operands = 1 : i64, tpu.core_type = #tpu.core_type<tc>} {
    %c0 = arith.constant 0 : index
    %c0_0 = arith.constant 0 : index
    %0 = vector.load %arg0[%c0, %c0_0] : memref<64x10xf32, #tpu.memory_space<vmem>>, vector<64x10xf32>
    %c0_1 = arith.constant 0 : index
    %c0_2 = arith.constant 0 : index
    %1 = vector.load %arg1[%c0_1, %c0_2] : memref<10x384xf32, #tpu.memory_space<vmem>>, vector<10x384xf32>
    %cst = arith.constant dense<0.000000e+00> : vector<64x384xf32>
    %2 = tpu.matmul %0, %1, %cst {dimension_numbers = #tpu.dot_dimension_numbers<[1], [0], [0], [1], [0, 0, 1, 1], [], []>} : vector<64x10xf32>, vector<10x384xf32>, vector<64x384xf32> -> vector<64x384xf32>
    %c0_3 = arith.constant 0 : index
    %c0_4 = arith.constant 0 : index
    %3 = vector.load %arg2[%c0_3, %c0_4] : memref<1x384xf32, #tpu.memory_space<vmem>>, vector<1x384xf32>
    %4 = vector.broadcast %3 : vector<1x384xf32> to vector<64x384xf32>
    %5 = arith.addf %2, %4 : vector<64x384xf32>
    %c0_5 = arith.constant 0 : index
    %c0_6 = arith.constant 0 : index
    %6 = vector.load %arg8[%c0_5, %c0_6] : memref<64x384xf32, #tpu.memory_space<vmem>>, vector<64x384xf32>
    tpu.vector_store %arg8[%c0_5, %c0_6], %5 {strides = array<i32>} : memref<64x384xf32, #tpu.memory_space<vmem>>, vector<64x384xf32>,
    %c0_7 = arith.constant 0 : index
    %c0_8 = arith.constant 0 : index
    %7 = vector.load %arg4[%c0_7, %c0_8] : memref<1x128xf32, #tpu.memory_space<vmem>>, vector<1x128xf32>
    %8 = vector.shape_cast %7 : vector<1x128xf32> to vector<1x128xf32>
    %9 = vector.broadcast %8 : vector<1x128xf32> to vector<8x128xf32>
    %cst_9 = arith.constant 0.000000e+00 : f32
    %10 = vector.broadcast %cst_9 : f32 to vector<8x128xf32>
    %c0_10 = arith.constant 0 : index
    %c0_11 = arith.constant 0 : index
    %11 = vector.load %arg8[%c0_10, %c0_11] : memref<64x384xf32, #tpu.memory_space<vmem>>, vector<8x384xf32>
    %c0_12 = arith.constant 0 : index
    %c0_13 = arith.constant 0 : index
    %12 = vector.load %arg3[%c0_12, %c0_13] : memref<128x384xf32, #tpu.memory_space<vmem>>, vector<128x384xf32>
    %cst_14 = arith.constant dense<0.000000e+00> : vector<8x384xf32>
    %13 = tpu.matmul %10, %12, %cst_14 {dimension_numbers = #tpu.dot_dimension_numbers<[1], [0], [0], [1], [0, 0, 1, 1], [], []>} : vector<8x128xf32>, vector<128x384xf32>, vector<8x384xf32> -> vector<8x384xf32>
    %14 = vector.extract_strided_slice %11 {offsets = [0, 0], sizes = [8, 256], strides = [1, 1]} : vector<8x384xf32> to vector<8x256xf32>
    %15 = vector.extract_strided_slice %13 {offsets = [0, 0], sizes = [8, 256], strides = [1, 1]} : vector<8x384xf32> to vector<8x256xf32>
    %16 = arith.addf %14, %15 : vector<8x256xf32>
    %cst_15 = arith.constant 5.000000e-01 : f32
    %17 = vector.broadcast %cst_15 : f32 to vector<8x256xf32>
    %18 = arith.mulf %17, %16 : vector<8x256xf32>
    %19 = math.tanh %18 : vector<8x256xf32>
    %cst_16 = arith.constant 5.000000e-01 : f32
    %20 = vector.broadcast %cst_16 : f32 to vector<8x256xf32>
    %21 = arith.mulf %20, %19 : vector<8x256xf32>
    %cst_17 = arith.constant 5.000000e-01 : f32
    %22 = vector.broadcast %cst_17 : f32 to vector<8x256xf32>
    %23 = arith.addf %21, %22 : vector<8x256xf32>
    %24 = vector.extract_strided_slice %23 {offsets = [0, 0], sizes = [8, 128], strides = [1, 1]} : vector<8x256xf32> to vector<8x128xf32>
    %25 = vector.extract_strided_slice %23 {offsets = [0, 128], sizes = [8, 128], strides = [1, 1]} : vector<8x256xf32> to vector<8x128xf32>
    %26 = vector.extract_strided_slice %11 {offsets = [0, 256], sizes = [8, 128], strides = [1, 1]} : vector<8x384xf32> to vector<8x128xf32>
    %27 = vector.extract_strided_slice %13 {offsets = [0, 256], sizes = [8, 128], strides = [1, 1]} : vector<8x384xf32> to vector<8x128xf32>
    %28 = arith.addf %27, %9 : vector<8x128xf32>
    %29 = arith.mulf %24, %28 : vector<8x128xf32>
    %30 = arith.addf %26, %29 : vector<8x128xf32>
    %31 = math.tanh %30 : vector<8x128xf32>
    %32 = arith.subf %10, %31 : vector<8x128xf32>
    %33 = arith.mulf %25, %32 : vector<8x128xf32>
    %34 = arith.addf %31, %33 : vector<8x128xf32>
    %c8 = arith.constant 8 : index
    %c0_18 = arith.constant 0 : index
    %35 = vector.load %arg8[%c8, %c0_18] : memref<64x384xf32, #tpu.memory_space<vmem>>, vector<8x384xf32>
    %c0_19 = arith.constant 0 : index
    %c0_20 = arith.constant 0 : index
    %36 = vector.load %arg3[%c0_19, %c0_20] : memref<128x384xf32, #tpu.memory_space<vmem>>, vector<128x384xf32>
    %cst_21 = arith.constant dense<0.000000e+00> : vector<8x384xf32>
    %37 = tpu.matmul %34, %36, %cst_21 {dimension_numbers = #tpu.dot_dimension_numbers<[1], [0], [0], [1], [0, 0, 1, 1], [], []>} : vector<8x128xf32>, vector<128x384xf32>, vector<8x384xf32> -> vector<8x384xf32>
    %38 = vector.extract_strided_slice %35 {offsets = [0, 0], sizes = [8, 256], strides = [1, 1]} : vector<8x384xf32> to vector<8x256xf32>
    %39 = vector.extract_strided_slice %37 {offsets = [0, 0], sizes = [8, 256], strides = [1, 1]} : vector<8x384xf32> to vector<8x256xf32>
    %40 = arith.addf %38, %39 : vector<8x256xf32>
    %cst_22 = arith.constant 5.000000e-01 : f32
    %41 = vector.broadcast %cst_22 : f32 to vector<8x256xf32>
    %42 = arith.mulf %41, %40 : vector<8x256xf32>
    %43 = math.tanh %42 : vector<8x256xf32>
    %cst_23 = arith.constant 5.000000e-01 : f32
    %44 = vector.broadcast %cst_23 : f32 to vector<8x256xf32>
    %45 = arith.mulf %44, %43 : vector<8x256xf32>
    %cst_24 = arith.constant 5.000000e-01 : f32
    %46 = vector.broadcast %cst_24 : f32 to vector<8x256xf32>
    %47 = arith.addf %45, %46 : vector<8x256xf32>
    %48 = vector.extract_strided_slice %47 {offsets = [0, 0], sizes = [8, 128], strides = [1, 1]} : vector<8x256xf32> to vector<8x128xf32>
    %49 = vector.extract_strided_slice %47 {offsets = [0, 128], sizes = [8, 128], strides = [1, 1]} : vector<8x256xf32> to vector<8x128xf32>
    %50 = vector.extract_strided_slice %35 {offsets = [0, 256], sizes = [8, 128], strides = [1, 1]} : vector<8x384xf32> to vector<8x128xf32>
    %51 = vector.extract_strided_slice %37 {offsets = [0, 256], sizes = [8, 128], strides = [1, 1]} : vector<8x384xf32> to vector<8x128xf32>
    %52 = arith.addf %51, %9 : vector<8x128xf32>
    %53 = arith.mulf %48, %52 : vector<8x128xf32>
    %54 = arith.addf %50, %53 : vector<8x128xf32>
    %55 = math.tanh %54 : vector<8x128xf32>
    %56 = arith.subf %34, %55 : vector<8x128xf32>
    %57 = arith.mulf %49, %56 : vector<8x128xf32>
    %58 = arith.addf %55, %57 : vector<8x128xf32>
    %c16 = arith.constant 16 : index
    %c0_25 = arith.constant 0 : index
    %59 = vector.load %arg8[%c16, %c0_25] : memref<64x384xf32, #tpu.memory_space<vmem>>, vector<8x384xf32>
    %c0_26 = arith.constant 0 : index
    %c0_27 = arith.constant 0 : index
    %60 = vector.load %arg3[%c0_26, %c0_27] : memref<128x384xf32, #tpu.memory_space<vmem>>, vector<128x384xf32>
    %cst_28 = arith.constant dense<0.000000e+00> : vector<8x384xf32>
    %61 = tpu.matmul %58, %60, %cst_28 {dimension_numbers = #tpu.dot_dimension_numbers<[1], [0], [0], [1], [0, 0, 1, 1], [], []>} : vector<8x128xf32>, vector<128x384xf32>, vector<8x384xf32> -> vector<8x384xf32>
    %62 = vector.extract_strided_slice %59 {offsets = [0, 0], sizes = [8, 256], strides = [1, 1]} : vector<8x384xf32> to vector<8x256xf32>
    %63 = vector.extract_strided_slice %61 {offsets = [0, 0], sizes = [8, 256], strides = [1, 1]} : vector<8x384xf32> to vector<8x256xf32>
    %64 = arith.addf %62, %63 : vector<8x256xf32>
    %cst_29 = arith.constant 5.000000e-01 : f32
    %65 = vector.broadcast %cst_29 : f32 to vector<8x256xf32>
    %66 = arith.mulf %65, %64 : vector<8x256xf32>
    %67 = math.tanh %66 : vector<8x256xf32>
    %cst_30 = arith.constant 5.000000e-01 : f32
    %68 = vector.broadcast %cst_30 : f32 to vector<8x256xf32>
    %69 = arith.mulf %68, %67 : vector<8x256xf32>
    %cst_31 = arith.constant 5.000000e-01 : f32
    %70 = vector.broadcast %cst_31 : f32 to vector<8x256xf32>
    %71 = arith.addf %69, %70 : vector<8x256xf32>
    %72 = vector.extract_strided_slice %71 {offsets = [0, 0], sizes = [8, 128], strides = [1, 1]} : vector<8x256xf32> to vector<8x128xf32>
    %73 = vector.extract_strided_slice %71 {offsets = [0, 128], sizes = [8, 128], strides = [1, 1]} : vector<8x256xf32> to vector<8x128xf32>
    %74 = vector.extract_strided_slice %59 {offsets = [0, 256], sizes = [8, 128], strides = [1, 1]} : vector<8x384xf32> to vector<8x128xf32>
    %75 = vector.extract_strided_slice %61 {offsets = [0, 256], sizes = [8, 128], strides = [1, 1]} : vector<8x384xf32> to vector<8x128xf32>
    %76 = arith.addf %75, %9 : vector<8x128xf32>
    %77 = arith.mulf %72, %76 : vector<8x128xf32>
    %78 = arith.addf %74, %77 : vector<8x128xf32>
    %79 = math.tanh %78 : vector<8x128xf32>
    %80 = arith.subf %58, %79 : vector<8x128xf32>
    %81 = arith.mulf %73, %80 : vector<8x128xf32>
    %82 = arith.addf %79, %81 : vector<8x128xf32>
    %c24 = arith.constant 24 : index
    %c0_32 = arith.constant 0 : index
    %83 = vector.load %arg8[%c24, %c0_32] : memref<64x384xf32, #tpu.memory_space<vmem>>, vector<8x384xf32>
    %c0_33 = arith.constant 0 : index
    %c0_34 = arith.constant 0 : index
    %84 = vector.load %arg3[%c0_33, %c0_34] : memref<128x384xf32, #tpu.memory_space<vmem>>, vector<128x384xf32>
    %cst_35 = arith.constant dense<0.000000e+00> : vector<8x384xf32>
    %85 = tpu.matmul %82, %84, %cst_35 {dimension_numbers = #tpu.dot_dimension_numbers<[1], [0], [0], [1], [0, 0, 1, 1], [], []>} : vector<8x128xf32>, vector<128x384xf32>, vector<8x384xf32> -> vector<8x384xf32>
    %86 = vector.extract_strided_slice %83 {offsets = [0, 0], sizes = [8, 256], strides = [1, 1]} : vector<8x384xf32> to vector<8x256xf32>
    %87 = vector.extract_strided_slice %85 {offsets = [0, 0], sizes = [8, 256], strides = [1, 1]} : vector<8x384xf32> to vector<8x256xf32>
    %88 = arith.addf %86, %87 : vector<8x256xf32>
    %cst_36 = arith.constant 5.000000e-01 : f32
    %89 = vector.broadcast %cst_36 : f32 to vector<8x256xf32>
    %90 = arith.mulf %89, %88 : vector<8x256xf32>
    %91 = math.tanh %90 : vector<8x256xf32>
    %cst_37 = arith.constant 5.000000e-01 : f32
    %92 = vector.broadcast %cst_37 : f32 to vector<8x256xf32>
    %93 = arith.mulf %92, %91 : vector<8x256xf32>
    %cst_38 = arith.constant 5.000000e-01 : f32
    %94 = vector.broadcast %cst_38 : f32 to vector<8x256xf32>
    %95 = arith.addf %93, %94 : vector<8x256xf32>
    %96 = vector.extract_strided_slice %95 {offsets = [0, 0], sizes = [8, 128], strides = [1, 1]} : vector<8x256xf32> to vector<8x128xf32>
    %97 = vector.extract_strided_slice %95 {offsets = [0, 128], sizes = [8, 128], strides = [1, 1]} : vector<8x256xf32> to vector<8x128xf32>
    %98 = vector.extract_strided_slice %83 {offsets = [0, 256], sizes = [8, 128], strides = [1, 1]} : vector<8x384xf32> to vector<8x128xf32>
    %99 = vector.extract_strided_slice %85 {offsets = [0, 256], sizes = [8, 128], strides = [1, 1]} : vector<8x384xf32> to vector<8x128xf32>
    %100 = arith.addf %99, %9 : vector<8x128xf32>
    %101 = arith.mulf %96, %100 : vector<8x128xf32>
    %102 = arith.addf %98, %101 : vector<8x128xf32>
    %103 = math.tanh %102 : vector<8x128xf32>
    %104 = arith.subf %82, %103 : vector<8x128xf32>
    %105 = arith.mulf %97, %104 : vector<8x128xf32>
    %106 = arith.addf %103, %105 : vector<8x128xf32>
    %c32 = arith.constant 32 : index
    %c0_39 = arith.constant 0 : index
    %107 = vector.load %arg8[%c32, %c0_39] : memref<64x384xf32, #tpu.memory_space<vmem>>, vector<8x384xf32>
    %c0_40 = arith.constant 0 : index
    %c0_41 = arith.constant 0 : index
    %108 = vector.load %arg3[%c0_40, %c0_41] : memref<128x384xf32, #tpu.memory_space<vmem>>, vector<128x384xf32>
    %cst_42 = arith.constant dense<0.000000e+00> : vector<8x384xf32>
    %109 = tpu.matmul %106, %108, %cst_42 {dimension_numbers = #tpu.dot_dimension_numbers<[1], [0], [0], [1], [0, 0, 1, 1], [], []>} : vector<8x128xf32>, vector<128x384xf32>, vector<8x384xf32> -> vector<8x384xf32>
    %110 = vector.extract_strided_slice %107 {offsets = [0, 0], sizes = [8, 256], strides = [1, 1]} : vector<8x384xf32> to vector<8x256xf32>
    %111 = vector.extract_strided_slice %109 {offsets = [0, 0], sizes = [8, 256], strides = [1, 1]} : vector<8x384xf32> to vector<8x256xf32>
    %112 = arith.addf %110, %111 : vector<8x256xf32>
    %cst_43 = arith.constant 5.000000e-01 : f32
    %113 = vector.broadcast %cst_43 : f32 to vector<8x256xf32>
    %114 = arith.mulf %113, %112 : vector<8x256xf32>
    %115 = math.tanh %114 : vector<8x256xf32>
    %cst_44 = arith.constant 5.000000e-01 : f32
    %116 = vector.broadcast %cst_44 : f32 to vector<8x256xf32>
    %117 = arith.mulf %116, %115 : vector<8x256xf32>
    %cst_45 = arith.constant 5.000000e-01 : f32
    %118 = vector.broadcast %cst_45 : f32 to vector<8x256xf32>
    %119 = arith.addf %117, %118 : vector<8x256xf32>
    %120 = vector.extract_strided_slice %119 {offsets = [0, 0], sizes = [8, 128], strides = [1, 1]} : vector<8x256xf32> to vector<8x128xf32>
    %121 = vector.extract_strided_slice %119 {offsets = [0, 128], sizes = [8, 128], strides = [1, 1]} : vector<8x256xf32> to vector<8x128xf32>
    %122 = vector.extract_strided_slice %107 {offsets = [0, 256], sizes = [8, 128], strides = [1, 1]} : vector<8x384xf32> to vector<8x128xf32>
    %123 = vector.extract_strided_slice %109 {offsets = [0, 256], sizes = [8, 128], strides = [1, 1]} : vector<8x384xf32> to vector<8x128xf32>
    %124 = arith.addf %123, %9 : vector<8x128xf32>
    %125 = arith.mulf %120, %124 : vector<8x128xf32>
    %126 = arith.addf %122, %125 : vector<8x128xf32>
    %127 = math.tanh %126 : vector<8x128xf32>
    %128 = arith.subf %106, %127 : vector<8x128xf32>
    %129 = arith.mulf %121, %128 : vector<8x128xf32>
    %130 = arith.addf %127, %129 : vector<8x128xf32>
    %c40 = arith.constant 40 : index
    %c0_46 = arith.constant 0 : index
    %131 = vector.load %arg8[%c40, %c0_46] : memref<64x384xf32, #tpu.memory_space<vmem>>, vector<8x384xf32>
    %c0_47 = arith.constant 0 : index
    %c0_48 = arith.constant 0 : index
    %132 = vector.load %arg3[%c0_47, %c0_48] : memref<128x384xf32, #tpu.memory_space<vmem>>, vector<128x384xf32>
    %cst_49 = arith.constant dense<0.000000e+00> : vector<8x384xf32>
    %133 = tpu.matmul %130, %132, %cst_49 {dimension_numbers = #tpu.dot_dimension_numbers<[1], [0], [0], [1], [0, 0, 1, 1], [], []>} : vector<8x128xf32>, vector<128x384xf32>, vector<8x384xf32> -> vector<8x384xf32>
    %134 = vector.extract_strided_slice %131 {offsets = [0, 0], sizes = [8, 256], strides = [1, 1]} : vector<8x384xf32> to vector<8x256xf32>
    %135 = vector.extract_strided_slice %133 {offsets = [0, 0], sizes = [8, 256], strides = [1, 1]} : vector<8x384xf32> to vector<8x256xf32>
    %136 = arith.addf %134, %135 : vector<8x256xf32>
    %cst_50 = arith.constant 5.000000e-01 : f32
    %137 = vector.broadcast %cst_50 : f32 to vector<8x256xf32>
    %138 = arith.mulf %137, %136 : vector<8x256xf32>
    %139 = math.tanh %138 : vector<8x256xf32>
    %cst_51 = arith.constant 5.000000e-01 : f32
    %140 = vector.broadcast %cst_51 : f32 to vector<8x256xf32>
    %141 = arith.mulf %140, %139 : vector<8x256xf32>
    %cst_52 = arith.constant 5.000000e-01 : f32
    %142 = vector.broadcast %cst_52 : f32 to vector<8x256xf32>
    %143 = arith.addf %141, %142 : vector<8x256xf32>
    %144 = vector.extract_strided_slice %143 {offsets = [0, 0], sizes = [8, 128], strides = [1, 1]} : vector<8x256xf32> to vector<8x128xf32>
    %145 = vector.extract_strided_slice %143 {offsets = [0, 128], sizes = [8, 128], strides = [1, 1]} : vector<8x256xf32> to vector<8x128xf32>
    %146 = vector.extract_strided_slice %131 {offsets = [0, 256], sizes = [8, 128], strides = [1, 1]} : vector<8x384xf32> to vector<8x128xf32>
    %147 = vector.extract_strided_slice %133 {offsets = [0, 256], sizes = [8, 128], strides = [1, 1]} : vector<8x384xf32> to vector<8x128xf32>
    %148 = arith.addf %147, %9 : vector<8x128xf32>
    %149 = arith.mulf %144, %148 : vector<8x128xf32>
    %150 = arith.addf %146, %149 : vector<8x128xf32>
    %151 = math.tanh %150 : vector<8x128xf32>
    %152 = arith.subf %130, %151 : vector<8x128xf32>
    %153 = arith.mulf %145, %152 : vector<8x128xf32>
    %154 = arith.addf %151, %153 : vector<8x128xf32>
    %c48 = arith.constant 48 : index
    %c0_53 = arith.constant 0 : index
    %155 = vector.load %arg8[%c48, %c0_53] : memref<64x384xf32, #tpu.memory_space<vmem>>, vector<8x384xf32>
    %c0_54 = arith.constant 0 : index
    %c0_55 = arith.constant 0 : index
    %156 = vector.load %arg3[%c0_54, %c0_55] : memref<128x384xf32, #tpu.memory_space<vmem>>, vector<128x384xf32>
    %cst_56 = arith.constant dense<0.000000e+00> : vector<8x384xf32>
    %157 = tpu.matmul %154, %156, %cst_56 {dimension_numbers = #tpu.dot_dimension_numbers<[1], [0], [0], [1], [0, 0, 1, 1], [], []>} : vector<8x128xf32>, vector<128x384xf32>, vector<8x384xf32> -> vector<8x384xf32>
    %158 = vector.extract_strided_slice %155 {offsets = [0, 0], sizes = [8, 256], strides = [1, 1]} : vector<8x384xf32> to vector<8x256xf32>
    %159 = vector.extract_strided_slice %157 {offsets = [0, 0], sizes = [8, 256], strides = [1, 1]} : vector<8x384xf32> to vector<8x256xf32>
    %160 = arith.addf %158, %159 : vector<8x256xf32>
    %cst_57 = arith.constant 5.000000e-01 : f32
    %161 = vector.broadcast %cst_57 : f32 to vector<8x256xf32>
    %162 = arith.mulf %161, %160 : vector<8x256xf32>
    %163 = math.tanh %162 : vector<8x256xf32>
    %cst_58 = arith.constant 5.000000e-01 : f32
    %164 = vector.broadcast %cst_58 : f32 to vector<8x256xf32>
    %165 = arith.mulf %164, %163 : vector<8x256xf32>
    %cst_59 = arith.constant 5.000000e-01 : f32
    %166 = vector.broadcast %cst_59 : f32 to vector<8x256xf32>
    %167 = arith.addf %165, %166 : vector<8x256xf32>
    %168 = vector.extract_strided_slice %167 {offsets = [0, 0], sizes = [8, 128], strides = [1, 1]} : vector<8x256xf32> to vector<8x128xf32>
    %169 = vector.extract_strided_slice %167 {offsets = [0, 128], sizes = [8, 128], strides = [1, 1]} : vector<8x256xf32> to vector<8x128xf32>
    %170 = vector.extract_strided_slice %155 {offsets = [0, 256], sizes = [8, 128], strides = [1, 1]} : vector<8x384xf32> to vector<8x128xf32>
    %171 = vector.extract_strided_slice %157 {offsets = [0, 256], sizes = [8, 128], strides = [1, 1]} : vector<8x384xf32> to vector<8x128xf32>
    %172 = arith.addf %171, %9 : vector<8x128xf32>
    %173 = arith.mulf %168, %172 : vector<8x128xf32>
    %174 = arith.addf %170, %173 : vector<8x128xf32>
    %175 = math.tanh %174 : vector<8x128xf32>
    %176 = arith.subf %154, %175 : vector<8x128xf32>
    %177 = arith.mulf %169, %176 : vector<8x128xf32>
    %178 = arith.addf %175, %177 : vector<8x128xf32>
    %c56 = arith.constant 56 : index
    %c0_60 = arith.constant 0 : index
    %179 = vector.load %arg8[%c56, %c0_60] : memref<64x384xf32, #tpu.memory_space<vmem>>, vector<8x384xf32>
    %c0_61 = arith.constant 0 : index
    %c0_62 = arith.constant 0 : index
    %180 = vector.load %arg3[%c0_61, %c0_62] : memref<128x384xf32, #tpu.memory_space<vmem>>, vector<128x384xf32>
    %cst_63 = arith.constant dense<0.000000e+00> : vector<8x384xf32>
    %181 = tpu.matmul %178, %180, %cst_63 {dimension_numbers = #tpu.dot_dimension_numbers<[1], [0], [0], [1], [0, 0, 1, 1], [], []>} : vector<8x128xf32>, vector<128x384xf32>, vector<8x384xf32> -> vector<8x384xf32>
    %182 = vector.extract_strided_slice %179 {offsets = [0, 0], sizes = [8, 256], strides = [1, 1]} : vector<8x384xf32> to vector<8x256xf32>
    %183 = vector.extract_strided_slice %181 {offsets = [0, 0], sizes = [8, 256], strides = [1, 1]} : vector<8x384xf32> to vector<8x256xf32>
    %184 = arith.addf %182, %183 : vector<8x256xf32>
    %cst_64 = arith.constant 5.000000e-01 : f32
    %185 = vector.broadcast %cst_64 : f32 to vector<8x256xf32>
    %186 = arith.mulf %185, %184 : vector<8x256xf32>
    %187 = math.tanh %186 : vector<8x256xf32>
    %cst_65 = arith.constant 5.000000e-01 : f32
    %188 = vector.broadcast %cst_65 : f32 to vector<8x256xf32>
    %189 = arith.mulf %188, %187 : vector<8x256xf32>
    %cst_66 = arith.constant 5.000000e-01 : f32
    %190 = vector.broadcast %cst_66 : f32 to vector<8x256xf32>
    %191 = arith.addf %189, %190 : vector<8x256xf32>
    %192 = vector.extract_strided_slice %191 {offsets = [0, 0], sizes = [8, 128], strides = [1, 1]} : vector<8x256xf32> to vector<8x128xf32>
    %193 = vector.extract_strided_slice %191 {offsets = [0, 128], sizes = [8, 128], strides = [1, 1]} : vector<8x256xf32> to vector<8x128xf32>
    %194 = vector.extract_strided_slice %179 {offsets = [0, 256], sizes = [8, 128], strides = [1, 1]} : vector<8x384xf32> to vector<8x128xf32>
    %195 = vector.extract_strided_slice %181 {offsets = [0, 256], sizes = [8, 128], strides = [1, 1]} : vector<8x384xf32> to vector<8x128xf32>
    %196 = arith.addf %195, %9 : vector<8x128xf32>
    %197 = arith.mulf %192, %196 : vector<8x128xf32>
    %198 = arith.addf %194, %197 : vector<8x128xf32>
    %199 = math.tanh %198 : vector<8x128xf32>
    %200 = arith.subf %178, %199 : vector<8x128xf32>
    %201 = arith.mulf %193, %200 : vector<8x128xf32>
    %202 = arith.addf %199, %201 : vector<8x128xf32>
    %c0_67 = arith.constant 0 : index
    %c0_68 = arith.constant 0 : index
    %203 = vector.load %arg5[%c0_67, %c0_68] : memref<128x128xf32, #tpu.memory_space<vmem>>, vector<128x128xf32>
    %cst_69 = arith.constant dense<0.000000e+00> : vector<8x128xf32>
    %204 = tpu.matmul %202, %203, %cst_69 {dimension_numbers = #tpu.dot_dimension_numbers<[1], [0], [0], [1], [0, 0, 1, 1], [], []>} : vector<8x128xf32>, vector<128x128xf32>, vector<8x128xf32> -> vector<8x128xf32>
    %c0_70 = arith.constant 0 : index
    %c0_71 = arith.constant 0 : index
    %205 = vector.load %arg6[%c0_70, %c0_71] : memref<1x128xf32, #tpu.memory_space<vmem>>, vector<1x128xf32>
    %206 = vector.broadcast %205 : vector<1x128xf32> to vector<8x128xf32>
    %207 = arith.addf %204, %206 : vector<8x128xf32>
    %c0_72 = arith.constant 0 : index
    %c0_73 = arith.constant 0 : index
    %208 = vector.load %arg7[%c0_72, %c0_73] : memref<8x128xf32, #tpu.memory_space<vmem>>, vector<8x128xf32>
    tpu.vector_store %arg7[%c0_72, %c0_73], %207 {strides = array<i32>} : memref<8x128xf32, #tpu.memory_space<vmem>>, vector<8x128xf32>,
    return
  }
}

</mosaic_0001>

<llo_original>
// kernel: gru_net_forward.1
$region0: #{gru_net_forward.1}
  #allocation0 [shape = 'u32[]', space=smem, size = 0x4, offset = 0x4, fixed_abs, tag = 'smem constant byte address 0x4 - core index']
  #allocation1 [shape = 'u32[144,128]{1,0:T(1,128)}', space=vmem, size = 0x12000, scoped, tag = 'internal scratch']
  #allocation2 [shape = 'f32[64,384]{1,0:T(8,128)}', space=vmem, size = 0x18000, scoped, tag = 'scratch operand']
  %s0 = inlined_call_operand.vmem [shape: f32[64,10], index: 0, kind: input, shape index: {}]
  %s1 = inlined_call_operand.hbm [shape: f32[10,384], index: 1, kind: input, shape index: {}]
  %s2 = inlined_call_operand.hbm [shape: f32[1,384], index: 2, kind: input, shape index: {}]
  %s3 = inlined_call_operand.hbm [shape: f32[128,384], index: 3, kind: input, shape index: {}]
  %s4 = inlined_call_operand.vmem [shape: f32[1,128], index: 4, kind: input, shape index: {}]
  %s5 = inlined_call_operand.vmem [shape: f32[128,128], index: 5, kind: input, shape index: {}]
  %s6 = inlined_call_operand.vmem [shape: f32[1,128], index: 6, kind: input, shape index: {}]
  %s7 = inlined_call_operand.vmem [shape: f32[8,128], index: 7, kind: output, shape index: {}]
  %s8 = sld [smem:[#allocation0]]
  $region50: #{gru_net_forward.1} parent=0
    _
  %s10 = ssub.s32 1, %s8
  %s11 = scalar_select 0, %s10, %s8
  $region1: #{gru_net_forward.1} parent=0
    #allocation3 [shape = 'u8[24576]{0}', space=vmem, size = 0x6000, scoped, tag = 'input window, operand 1, single buffered']
    #allocation4 [shape = 's32[1]{0}', space=sflag, size = 0x4, scoped, tag = 'scoped memory for gru_net_forward.1']
    #allocation5 [shape = 'u8[1536]{0}', space=vmem, size = 0x800, scoped, tag = 'input window, operand 2, single buffered']
    #allocation6 [shape = 's32[1]{0}', space=sflag, size = 0x4, scoped, tag = 'scoped memory for gru_net_forward.1']
    #allocation7 [shape = 'u8[196608]{0}', space=vmem, size = 0x30000, scoped, tag = 'input window, operand 3, single buffered']
    %12 = vsyncpa [#allocation4], 0
    %13 = vsyncpa [#allocation6], 0
    // Predicated region
    $region2: #{gru_net_forward.1} parent=1 // pred_check
      _
    $region3: #{gru_net_forward.1} parent=1 // pred_check_branch
      %15 = sbr.rel (0) target = $region5
    $region4: #{gru_net_forward.1} parent=1 // pred_region
      _
    $region5: #{gru_net_forward.1} parent=1 // pred_fallthru
      _
    // Predicated region
    $region6: #{gru_net_forward.1} parent=1 // pred_check
      _
    $region7: #{gru_net_forward.1} parent=1 // pred_check_branch
      %17 = sbr.rel (0) target = $region9
    $region8: #{gru_net_forward.1} parent=1 // pred_region
      %s19 = ssub.s32 768, 768
      %20 = vsyncadd [#allocation4], %s19
      %s21 = sshll.u32 [#allocation3], 4
      %s22 = int_to_ptr.vmem [resolvable:$true] %s21
      %27 = dma.hbm_to_vmem [thread:$0]  %s1, 768, %s22, [#allocation4], 384, 384, 24
    $region9: #{gru_net_forward.1} parent=1 // pred_fallthru
      _
    // Predicated region
    $region10: #{gru_net_forward.1} parent=1 // pred_check
      _
    $region11: #{gru_net_forward.1} parent=1 // pred_check_branch
      %29 = sbr.rel (0) target = $region13
    $region12: #{gru_net_forward.1} parent=1 // pred_region
      %s31 = ssub.s32 48, 48
      %32 = vsyncadd [#allocation6], %s31
      %s34 = sshll.u32 [#allocation5], 4
      %s35 = int_to_ptr.vmem [resolvable:$true] %s34
      %37 = dma.hbm_to_vmem [thread:$0]  %s2, 48, %s35, [#allocation6]
    $region13: #{gru_net_forward.1} parent=1 // pred_fallthru
      _
    // Predicated region
    $region14: #{gru_net_forward.1} parent=1 // pred_check
      _
    $region15: #{gru_net_forward.1} parent=1 // pred_check_branch
      %39 = sbr.rel (0) target = $region17
    $region16: #{gru_net_forward.1} parent=1 // pred_region
      %s41 = ssub.s32 6144, 6144
      %42 = vsyncadd [#allocation6], %s41
      %s43 = sshll.u32 [#allocation7], 4
      %s44 = int_to_ptr.vmem [resolvable:$true] %s43
      %49 = dma.hbm_to_vmem [thread:$0]  %s3, 6144, %s44, [#allocation6], 384, 384, 24
    $region17: #{gru_net_forward.1} parent=1 // pred_fallthru
      _
    // Predicated region
    $region18: #{gru_net_forward.1} parent=1 // pred_check
      _
    $region19: #{gru_net_forward.1} parent=1 // pred_check_branch
      %51 = sbr.rel (0) target = $region21
    $region20: #{gru_net_forward.1} parent=1 // pred_region
      _
    $region21: #{gru_net_forward.1} parent=1 // pred_fallthru
      _
    // Predicated region
    $region22: #{gru_net_forward.1} parent=1 // pred_check
      _
    $region23: #{gru_net_forward.1} parent=1 // pred_check_branch
      %53 = sbr.rel (0) target = $region25
    $region24: #{gru_net_forward.1} parent=1 // pred_region
      _
    $region25: #{gru_net_forward.1} parent=1 // pred_fallthru
      _
    // Predicated region
    $region26: #{gru_net_forward.1} parent=1 // pred_check
      _
    $region27: #{gru_net_forward.1} parent=1 // pred_check_branch
      %55 = sbr.rel (0) target = $region29
    $region28: #{gru_net_forward.1} parent=1 // pred_region
      _
    $region29: #{gru_net_forward.1} parent=1 // pred_fallthru
      _
    // Predicated region
    $region30: #{gru_net_forward.1} parent=1 // pred_check
      _
    $region31: #{gru_net_forward.1} parent=1 // pred_check_branch
      %57 = sbr.rel (0) target = $region33
    $region32: #{gru_net_forward.1} parent=1 // pred_region
      %58 = dma.done [#allocation4], 768
    $region33: #{gru_net_forward.1} parent=1 // pred_fallthru
      _
    // Predicated region
    $region34: #{gru_net_forward.1} parent=1 // pred_check
      _
    $region35: #{gru_net_forward.1} parent=1 // pred_check_branch
      %60 = sbr.rel (0) target = $region37
    $region36: #{gru_net_forward.1} parent=1 // pred_region
      %61 = dma.done [#allocation6], 48
    $region37: #{gru_net_forward.1} parent=1 // pred_fallthru
      _
    // Predicated region
    $region38: #{gru_net_forward.1} parent=1 // pred_check
      _
    $region39: #{gru_net_forward.1} parent=1 // pred_check_branch
      %63 = sbr.rel (0) target = $region41
    $region40: #{gru_net_forward.1} parent=1 // pred_region
      %64 = dma.done [#allocation6], 6144
    $region41: #{gru_net_forward.1} parent=1 // pred_fallthru
      _
    %v65 = vld [vmem:[%s0] sm:$0xff]
    %v66 = vld [vmem:[%s0 + $0x8] sm:$0xff]
    %v67 = vld [vmem:[%s0 + $0x10] sm:$0xff]
    %v68 = vld [vmem:[%s0 + $0x18] sm:$0xff]
    %v69 = vld [vmem:[%s0 + $0x20] sm:$0xff]
    %v70 = vld [vmem:[%s0 + $0x28] sm:$0xff]
    %v71 = vld [vmem:[%s0 + $0x30] sm:$0xff]
    %v72 = vld [vmem:[%s0 + $0x38] sm:$0xff]
    %v73 = vld [vmem:[#allocation3] sm:$0xff]
    %v74 = vld [vmem:[#allocation3 + $0x8] sm:$0xff]
    %v75 = vld [vmem:[#allocation3 + $0x10] sm:$0xff]
    %v76 = vld [vmem:[#allocation3 + $0x18] sm:$0x3]
    %v77 = vld [vmem:[#allocation3 + $0x20] sm:$0x3]
    %v78 = vld [vmem:[#allocation3 + $0x28] sm:$0x3]
    %v79 = vld [vmem:[#allocation5] sm:$0x7]
    %v81 = vlaneseq
    %v82 = vshrl.u32 %v81, 7
    %v83 = vsub.s32 0, %v82
    %v84 = vrot.slane %v79, %v83
    %v85 = vlaneseq
    %v86 = vshrl.u32 %v85, 7
    %v87 = vsub.s32 1, %v86
    %v88 = vrot.slane %v79, %v87
    %v89 = vlaneseq
    %v90 = vshrl.u32 %v89, 7
    %v91 = vsub.s32 2, %v90
    %v92 = vrot.slane %v79, %v91
    %vm96 = vcmask 80896
    %v98 = vsel %vm96, %v65, 0
    %v101 = vsel %vm96, %v66, 0
    %v104 = vsel %vm96, %v67, 0
    %v107 = vsel %vm96, %v68, 0
    %v110 = vsel %vm96, %v69, 0
    %v113 = vsel %vm96, %v70, 0
    %v116 = vsel %vm96, %v71, 0
    %v119 = vsel %vm96, %v72, 0
    %vm121 = vcmask 1041408
    %v123 = vsel %vm121, %v76, 0
    %v126 = vsel %vm121, %v77, 0
    %v129 = vsel %vm121, %v78, 0
    %131 = vmatprep.subr.mxu0 %v74
    %132 = vmatpush1.msra.mxu0 %v73
    %133 = vmatprep.subr.mxu0 %v126
    %134 = vmatpush1.msra.mxu0 %v123
    %135 = vmatprep.subr.mxu0 0.0
    %136 = vmatpush1.msra.mxu0 0.0
    %137 = vmatprep.subr.mxu0 0.0
    %138 = vmatpush1.msra.mxu0 0.0
    %139 = vmatprep.subr.mxu0 0.0
    %140 = vmatpush1.msra.mxu0 0.0
    %141 = vmatprep.subr.mxu0 0.0
    %142 = vmatpush1.msra.mxu0 0.0
    %143 = vmatprep.subr.mxu0 0.0
    %144 = vmatpush1.msra.mxu0 0.0
    %145 = vmatprep.subr.mxu0 0.0
    %146 = vmatpush1.msra.mxu0 0.0
    %147 = vmatprep.subr.mxu0 0.0
    %148 = vmatpush1.msra.mxu0 0.0
    %149 = vmatprep.subr.mxu0 0.0
    %150 = vmatpush1.msra.mxu0 0.0
    %151 = vmatprep.subr.mxu0 0.0
    %152 = vmatpush1.msra.mxu0 0.0
    %153 = vmatprep.subr.mxu0 0.0
    %154 = vmatpush1.msra.mxu0 0.0
    %155 = vmatprep.subr.mxu0 0.0
    %156 = vmatpush1.msra.mxu0 0.0
    %157 = vmatprep.subr.mxu0 0.0
    %158 = vmatpush1.msra.mxu0 0.0
    %159 = vmatprep.subr.mxu0 0.0
    %160 = vmatpush1.msra.mxu0 0.0
    %161 = vmatprep.subr.mxu0 0.0
    %162 = vmatpush1.msra.mxu0 0.0
    %163 = vmatprep.subr.mxu0 0.0
    %164 = vmatpush1.msra.mxu0 0.0
    %165 = vmatprep.subr.mxu0 0.0
    %166 = vmatpush1.msra.mxu0 0.0
    %167 = vmatprep.subr.mxu0 0.0
    %168 = vmatpush1.msra.mxu0 0.0
    %169 = vmatprep.subr.mxu0 0.0
    %170 = vmatpush1.msra.mxu0 0.0
    %171 = vmatprep.subr.mxu0 0.0
    %172 = vmatpush1.msra.mxu0 0.0
    %173 = vmatprep.subr.mxu0 0.0
    %174 = vmatpush1.msra.mxu0 0.0
    %175 = vmatprep.subr.mxu0 0.0
    %176 = vmatpush1.msra.mxu0 0.0
    %177 = vmatprep.subr.mxu0 0.0
    %178 = vmatpush1.msra.mxu0 0.0
    %179 = vmatprep.subr.mxu0 0.0
    %180 = vmatpush1.msra.mxu0 0.0
    %181 = vmatprep.subr.mxu0 0.0
    %182 = vmatpush1.msra.mxu0 0.0
    %183 = vmatprep.subr.mxu0 0.0
    %184 = vmatpush1.msra.mxu0 0.0
    %185 = vmatprep.subr.mxu0 0.0
    %186 = vmatpush1.msra.mxu0 0.0
    %187 = vmatprep.subr.mxu0 0.0
    %188 = vmatpush1.msra.mxu0 0.0
    %189 = vmatprep.subr.mxu0 0.0
    %190 = vmatpush1.msra.mxu0 0.0
    %191 = vmatprep.subr.mxu0 0.0
    %192 = vmatpush1.msra.mxu0 0.0
    %193 = vmatprep.subr.mxu0 0.0
    %194 = vmatpush1.msra.mxu0 0.0
    %195 = vmatprep.mubr.f32.mxu0 0.0
    %196 = vmatmul.mubr.f32.gmra.mrb[0].mxu0 %v98
    %v197 = vpop.f32.mrb[0].mxu0
    %v198 = vadd.f32 %v84, %v197
    %v199 = vpop.f32.mrb[0].mxu0
    %v200 = vadd.f32 %v88, %v199
    %201 = vmatprep.mubr.f32.mxu0 0.0
    %202 = vmatmul.mubr.f32.gmra.mrb[0].mxu0 %v101
    %v203 = vpop.f32.mrb[0].mxu0
    %v204 = vadd.f32 %v84, %v203
    %v205 = vpop.f32.mrb[0].mxu0
    %v206 = vadd.f32 %v88, %v205
    %207 = vmatprep.mubr.f32.mxu0 0.0
    %208 = vmatmul.mubr.f32.gmra.mrb[0].mxu0 %v104
    %v209 = vpop.f32.mrb[0].mxu0
    %v210 = vadd.f32 %v84, %v209
    %v211 = vpop.f32.mrb[0].mxu0
    %v212 = vadd.f32 %v88, %v211
    %213 = vmatprep.mubr.f32.mxu0 0.0
    %214 = vmatmul.mubr.f32.gmra.mrb[0].mxu0 %v107
    %v215 = vpop.f32.mrb[0].mxu0
    %v216 = vadd.f32 %v84, %v215
    %v217 = vpop.f32.mrb[0].mxu0
    %v218 = vadd.f32 %v88, %v217
    %219 = vmatprep.mubr.f32.mxu0 0.0
    %220 = vmatmul.mubr.f32.gmra.mrb[0].mxu0 %v110
    %v221 = vpop.f32.mrb[0].mxu0
    %v222 = vadd.f32 %v84, %v221
    %v223 = vpop.f32.mrb[0].mxu0
    %v224 = vadd.f32 %v88, %v223
    %225 = vmatprep.mubr.f32.mxu0 0.0
    %226 = vmatmul.mubr.f32.gmra.mrb[0].mxu0 %v113
    %v227 = vpop.f32.mrb[0].mxu0
    %v228 = vadd.f32 %v84, %v227
    %v229 = vpop.f32.mrb[0].mxu0
    %v230 = vadd.f32 %v88, %v229
    %231 = vmatprep.mubr.f32.mxu0 0.0
    %232 = vmatmul.mubr.f32.gmra.mrb[0].mxu0 %v116
    %v233 = vpop.f32.mrb[0].mxu0
    %v234 = vadd.f32 %v84, %v233
    %v235 = vpop.f32.mrb[0].mxu0
    %v236 = vadd.f32 %v88, %v235
    %237 = vmatprep.mubr.f32.mxu0 0.0
    %238 = vmatmul.mubr.f32.gmra.mrb[0].mxu0 %v119
    %v239 = vpop.f32.mrb[0].mxu0
    %v240 = vadd.f32 %v84, %v239
    %v241 = vpop.f32.mrb[0].mxu0
    %v242 = vadd.f32 %v88, %v241
    %243 = vdwg.mxu0
    %244 = vmatprep.subr.mxu0 0.0
    %245 = vmatpush1.msra.mxu0 %v75
    %246 = vmatprep.subr.mxu0 0.0
    %247 = vmatpush1.msra.mxu0 %v129
    %248 = vmatprep.subr.mxu0 0.0
    %249 = vmatpush1.msra.mxu0 0.0
    %250 = vmatprep.subr.mxu0 0.0
    %251 = vmatpush1.msra.mxu0 0.0
    %252 = vmatprep.subr.mxu0 0.0
    %253 = vmatpush1.msra.mxu0 0.0
    %254 = vmatprep.subr.mxu0 0.0
    %255 = vmatpush1.msra.mxu0 0.0
    %256 = vmatprep.subr.mxu0 0.0
    %257 = vmatpush1.msra.mxu0 0.0
    %258 = vmatprep.subr.mxu0 0.0
    %259 = vmatpush1.msra.mxu0 0.0
    %260 = vmatprep.subr.mxu0 0.0
    %261 = vmatpush1.msra.mxu0 0.0
    %262 = vmatprep.subr.mxu0 0.0
    %263 = vmatpush1.msra.mxu0 0.0
    %264 = vmatprep.subr.mxu0 0.0
    %265 = vmatpush1.msra.mxu0 0.0
    %266 = vmatprep.subr.mxu0 0.0
    %267 = vmatpush1.msra.mxu0 0.0
    %268 = vmatprep.subr.mxu0 0.0
    %269 = vmatpush1.msra.mxu0 0.0
    %270 = vmatprep.subr.mxu0 0.0
    %271 = vmatpush1.msra.mxu0 0.0
    %272 = vmatprep.subr.mxu0 0.0
    %273 = vmatpush1.msra.mxu0 0.0
    %274 = vmatprep.subr.mxu0 0.0
    %275 = vmatpush1.msra.mxu0 0.0
    %276 = vmatprep.subr.mxu0 0.0
    %277 = vmatpush1.msra.mxu0 0.0
    %278 = vmatprep.subr.mxu0 0.0
    %279 = vmatpush1.msra.mxu0 0.0
    %280 = vmatprep.subr.mxu0 0.0
    %281 = vmatpush1.msra.mxu0 0.0
    %282 = vmatprep.subr.mxu0 0.0
    %283 = vmatpush1.msra.mxu0 0.0
    %284 = vmatprep.subr.mxu0 0.0
    %285 = vmatpush1.msra.mxu0 0.0
    %286 = vmatprep.subr.mxu0 0.0
    %287 = vmatpush1.msra.mxu0 0.0
    %288 = vmatprep.subr.mxu0 0.0
    %289 = vmatpush1.msra.mxu0 0.0
    %290 = vmatprep.subr.mxu0 0.0
    %291 = vmatpush1.msra.mxu0 0.0
    %292 = vmatprep.subr.mxu0 0.0
    %293 = vmatpush1.msra.mxu0 0.0
    %294 = vmatprep.subr.mxu0 0.0
    %295 = vmatpush1.msra.mxu0 0.0
    %296 = vmatprep.subr.mxu0 0.0
    %297 = vmatpush1.msra.mxu0 0.0
    %298 = vmatprep.subr.mxu0 0.0
    %299 = vmatpush1.msra.mxu0 0.0
    %300 = vmatprep.subr.mxu0 0.0
    %301 = vmatpush1.msra.mxu0 0.0
    %302 = vmatprep.subr.mxu0 0.0
    %303 = vmatpush1.msra.mxu0 0.0
    %304 = vmatprep.subr.mxu0 0.0
    %305 = vmatpush1.msra.mxu0 0.0
    %306 = vmatprep.subr.mxu0 0.0
    %307 = vmatpush1.msra.mxu0 0.0
    %308 = vmatprep.mubr.f32.mxu0 0.0
    %309 = vmatmul.mubr.f32.gmra.mrb[0].mxu0 %v98
    %v310 = vpop.f32.mrb[0].mxu0
    %v311 = vadd.f32 %v92, %v310
    %v312 = vpop.f32.mrb[0].mxu0
    %313 = vmatprep.mubr.f32.mxu0 0.0
    %314 = vmatmul.mubr.f32.gmra.mrb[0].mxu0 %v101
    %v315 = vpop.f32.mrb[0].mxu0
    %v316 = vadd.f32 %v92, %v315
    %v317 = vpop.f32.mrb[0].mxu0
    %318 = vmatprep.mubr.f32.mxu0 0.0
    %319 = vmatmul.mubr.f32.gmra.mrb[0].mxu0 %v104
    %v320 = vpop.f32.mrb[0].mxu0
    %v321 = vadd.f32 %v92, %v320
    %v322 = vpop.f32.mrb[0].mxu0
    %323 = vmatprep.mubr.f32.mxu0 0.0
    %324 = vmatmul.mubr.f32.gmra.mrb[0].mxu0 %v107
    %v325 = vpop.f32.mrb[0].mxu0
    %v326 = vadd.f32 %v92, %v325
    %v327 = vpop.f32.mrb[0].mxu0
    %328 = vmatprep.mubr.f32.mxu0 0.0
    %329 = vmatmul.mubr.f32.gmra.mrb[0].mxu0 %v110
    %v330 = vpop.f32.mrb[0].mxu0
    %v331 = vadd.f32 %v92, %v330
    %v332 = vpop.f32.mrb[0].mxu0
    %333 = vmatprep.mubr.f32.mxu0 0.0
    %334 = vmatmul.mubr.f32.gmra.mrb[0].mxu0 %v113
    %v335 = vpop.f32.mrb[0].mxu0
    %v336 = vadd.f32 %v92, %v335
    %v337 = vpop.f32.mrb[0].mxu0
    %338 = vmatprep.mubr.f32.mxu0 0.0
    %339 = vmatmul.mubr.f32.gmra.mrb[0].mxu0 %v116
    %v340 = vpop.f32.mrb[0].mxu0
    %v341 = vadd.f32 %v92, %v340
    %v342 = vpop.f32.mrb[0].mxu0
    %343 = vmatprep.mubr.f32.mxu0 0.0
    %344 = vmatmul.mubr.f32.gmra.mrb[0].mxu0 %v119
    %v345 = vpop.f32.mrb[0].mxu0
    %v346 = vadd.f32 %v92, %v345
    %v347 = vpop.f32.mrb[0].mxu0
    %348 = vdwg.mxu0
    %349 = vst [vmem:[#allocation2] sm:$0xff] %v198
    %350 = vst [vmem:[#allocation2 + $0x8] sm:$0xff] %v200
    %351 = vst [vmem:[#allocation2 + $0x10] sm:$0xff] %v311
    %352 = vst [vmem:[#allocation2 + $0x18] sm:$0xff] %v204
    %353 = vst [vmem:[#allocation2 + $0x20] sm:$0xff] %v206
    %354 = vst [vmem:[#allocation2 + $0x28] sm:$0xff] %v316
    %355 = vst [vmem:[#allocation2 + $0x30] sm:$0xff] %v210
    %356 = vst [vmem:[#allocation2 + $0x38] sm:$0xff] %v212
    %357 = vst [vmem:[#allocation2 + $0x40] sm:$0xff] %v321
    %358 = vst [vmem:[#allocation2 + $0x48] sm:$0xff] %v216
    %359 = vst [vmem:[#allocation2 + $0x50] sm:$0xff] %v218
    %360 = vst [vmem:[#allocation2 + $0x58] sm:$0xff] %v326
    %361 = vst [vmem:[#allocation2 + $0x60] sm:$0xff] %v222
    %362 = vst [vmem:[#allocation2 + $0x68] sm:$0xff] %v224
    %363 = vst [vmem:[#allocation2 + $0x70] sm:$0xff] %v331
    %364 = vst [vmem:[#allocation2 + $0x78] sm:$0xff] %v228
    %365 = vst [vmem:[#allocation2 + $0x80] sm:$0xff] %v230
    %366 = vst [vmem:[#allocation2 + $0x88] sm:$0xff] %v336
    %367 = vst [vmem:[#allocation2 + $0x90] sm:$0xff] %v234
    %368 = vst [vmem:[#allocation2 + $0x98] sm:$0xff] %v236
    %369 = vst [vmem:[#allocation2 + $0xa0] sm:$0xff] %v341
    %370 = vst [vmem:[#allocation2 + $0xa8] sm:$0xff] %v240
    %371 = vst [vmem:[#allocation2 + $0xb0] sm:$0xff] %v242
    %372 = vst [vmem:[#allocation2 + $0xb8] sm:$0xff] %v346
    %v373 = vld [vmem:[%s4] sm:$0x1]
    %v375 = vlaneseq
    %v376 = vshrl.u32 %v375, 7
    %v377 = vsub.s32 0, %v376
    %v378 = vrot.slane %v373, %v377
    %v380 = vld [vmem:[#allocation2] sm:$0xff]
    %v381 = vld [vmem:[#allocation2 + $0x8] sm:$0xff]
    %v382 = vld [vmem:[#allocation2 + $0x10] sm:$0xff]
    %v383 = vld [vmem:[#allocation7] sm:$0xff]
    %v384 = vld [vmem:[#allocation7 + $0x8] sm:$0xff]
    %v385 = vld [vmem:[#allocation7 + $0x10] sm:$0xff]
    %v386 = vld [vmem:[#allocation7 + $0x18] sm:$0xff]
    %v387 = vld [vmem:[#allocation7 + $0x20] sm:$0xff]
    %v388 = vld [vmem:[#allocation7 + $0x28] sm:$0xff]
    %v389 = vld [vmem:[#allocation7 + $0x30] sm:$0xff]
    %v390 = vld [vmem:[#allocation7 + $0x38] sm:$0xff]
    %v391 = vld [vmem:[#allocation7 + $0x40] sm:$0xff]
    %v392 = vld [vmem:[#allocation7 + $0x48] sm:$0xff]
    %v393 = vld [vmem:[#allocation7 + $0x50] sm:$0xff]
    %v394 = vld [vmem:[#allocation7 + $0x58] sm:$0xff]
    %v395 = vld [vmem:[#allocation7 + $0x60] sm:$0xff]
    %v396 = vld [vmem:[#allocation7 + $0x68] sm:$0xff]
    %v397 = vld [vmem:[#allocation7 + $0x70] sm:$0xff]
    %v398 = vld [vmem:[#allocation7 + $0x78] sm:$0xff]
    %v399 = vld [vmem:[#allocation7 + $0x80] sm:$0xff]
    %v400 = vld [vmem:[#allocation7 + $0x88] sm:$0xff]
    %v401 = vld [vmem:[#allocation7 + $0x90] sm:$0xff]
    %v402 = vld [vmem:[#allocation7 + $0x98] sm:$0xff]
    %v403 = vld [vmem:[#allocation7 + $0xa0] sm:$0xff]
    %v404 = vld [vmem:[#allocation7 + $0xa8] sm:$0xff]
    %v405 = vld [vmem:[#allocation7 + $0xb0] sm:$0xff]
    %v406 = vld [vmem:[#allocation7 + $0xb8] sm:$0xff]
    %v407 = vld [vmem:[#allocation7 + $0xc0] sm:$0xff]
    %v408 = vld [vmem:[#allocation7 + $0xc8] sm:$0xff]
    %v409 = vld [vmem:[#allocation7 + $0xd0] sm:$0xff]
    %v410 = vld [vmem:[#allocation7 + $0xd8] sm:$0xff]
    %v411 = vld [vmem:[#allocation7 + $0xe0] sm:$0xff]
    %v412 = vld [vmem:[#allocation7 + $0xe8] sm:$0xff]
    %v413 = vld [vmem:[#allocation7 + $0xf0] sm:$0xff]
    %v414 = vld [vmem:[#allocation7 + $0xf8] sm:$0xff]
    %v415 = vld [vmem:[#allocation7 + $0x100] sm:$0xff]
    %v416 = vld [vmem:[#allocation7 + $0x108] sm:$0xff]
    %v417 = vld [vmem:[#allocation7 + $0x110] sm:$0xff]
    %v418 = vld [vmem:[#allocation7 + $0x118] sm:$0xff]
    %v419 = vld [vmem:[#allocation7 + $0x120] sm:$0xff]
    %v420 = vld [vmem:[#allocation7 + $0x128] sm:$0xff]
    %v421 = vld [vmem:[#allocation7 + $0x130] sm:$0xff]
    %v422 = vld [vmem:[#allocation7 + $0x138] sm:$0xff]
    %v423 = vld [vmem:[#allocation7 + $0x140] sm:$0xff]
    %v424 = vld [vmem:[#allocation7 + $0x148] sm:$0xff]
    %v425 = vld [vmem:[#allocation7 + $0x150] sm:$0xff]
    %v426 = vld [vmem:[#allocation7 + $0x158] sm:$0xff]
    %v427 = vld [vmem:[#allocation7 + $0x160] sm:$0xff]
    %v428 = vld [vmem:[#allocation7 + $0x168] sm:$0xff]
    %v429 = vld [vmem:[#allocation7 + $0x170] sm:$0xff]
    %v430 = vld [vmem:[#allocation7 + $0x178] sm:$0xff]
    %431 = vmatprep.subr.mxu0 %v384
    %432 = vmatpush1.msra.mxu0 %v383
    %433 = vmatprep.subr.mxu0 %v387
    %434 = vmatpush1.msra.mxu0 %v386
    %435 = vmatprep.subr.mxu0 %v390
    %436 = vmatpush1.msra.mxu0 %v389
    %437 = vmatprep.subr.mxu0 %v393
    %438 = vmatpush1.msra.mxu0 %v392
    %439 = vmatprep.subr.mxu0 %v396
    %440 = vmatpush1.msra.mxu0 %v395
    %441 = vmatprep.subr.mxu0 %v399
    %442 = vmatpush1.msra.mxu0 %v398
    %443 = vmatprep.subr.mxu0 %v402
    %444 = vmatpush1.msra.mxu0 %v401
    %445 = vmatprep.subr.mxu0 %v405
    %446 = vmatpush1.msra.mxu0 %v404
    %447 = vmatprep.subr.mxu0 %v408
    %448 = vmatpush1.msra.mxu0 %v407
    %449 = vmatprep.subr.mxu0 %v411
    %450 = vmatpush1.msra.mxu0 %v410
    %451 = vmatprep.subr.mxu0 %v414
    %452 = vmatpush1.msra.mxu0 %v413
    %453 = vmatprep.subr.mxu0 %v417
    %454 = vmatpush1.msra.mxu0 %v416
    %455 = vmatprep.subr.mxu0 %v420
    %456 = vmatpush1.msra.mxu0 %v419
    %457 = vmatprep.subr.mxu0 %v423
    %458 = vmatpush1.msra.mxu0 %v422
    %459 = vmatprep.subr.mxu0 %v426
    %460 = vmatpush1.msra.mxu0 %v425
    %461 = vmatprep.subr.mxu0 %v429
    %462 = vmatpush1.msra.mxu0 %v428
    %463 = vmatprep.subr.mxu0 0.0
    %464 = vmatpush1.msra.mxu0 0.0
    %465 = vmatprep.subr.mxu0 0.0
    %466 = vmatpush1.msra.mxu0 0.0
    %467 = vmatprep.subr.mxu0 0.0
    %468 = vmatpush1.msra.mxu0 0.0
    %469 = vmatprep.subr.mxu0 0.0
    %470 = vmatpush1.msra.mxu0 0.0
    %471 = vmatprep.subr.mxu0 0.0
    %472 = vmatpush1.msra.mxu0 0.0
    %473 = vmatprep.subr.mxu0 0.0
    %474 = vmatpush1.msra.mxu0 0.0
    %475 = vmatprep.subr.mxu0 0.0
    %476 = vmatpush1.msra.mxu0 0.0
    %477 = vmatprep.subr.mxu0 0.0
    %478 = vmatpush1.msra.mxu0 0.0
    %479 = vmatprep.subr.mxu0 0.0
    %480 = vmatpush1.msra.mxu0 0.0
    %481 = vmatprep.subr.mxu0 0.0
    %482 = vmatpush1.msra.mxu0 0.0
    %483 = vmatprep.subr.mxu0 0.0
    %484 = vmatpush1.msra.mxu0 0.0
    %485 = vmatprep.subr.mxu0 0.0
    %486 = vmatpush1.msra.mxu0 0.0
    %487 = vmatprep.subr.mxu0 0.0
    %488 = vmatpush1.msra.mxu0 0.0
    %489 = vmatprep.subr.mxu0 0.0
    %490 = vmatpush1.msra.mxu0 0.0
    %491 = vmatprep.subr.mxu0 0.0
    %492 = vmatpush1.msra.mxu0 0.0
    %493 = vmatprep.subr.mxu0 0.0
    %494 = vmatpush1.msra.mxu0 0.0
    %495 = vmatprep.mubr.f32.mxu0 0.0
    %496 = vmatmul.mubr.f32.gmra.mrb[0].mxu0 0.0
    %v497 = vpop.f32.mrb[0].mxu0
    %v498 = vadd.f32 0.0, %v497
    %v499 = vpop.f32.mrb[0].mxu0
    %v500 = vadd.f32 0.0, %v499
    %501 = vdwg.mxu0
    %502 = vmatprep.subr.mxu0 0.0
    %503 = vmatpush1.msra.mxu0 %v385
    %504 = vmatprep.subr.mxu0 0.0
    %505 = vmatpush1.msra.mxu0 %v388
    %506 = vmatprep.subr.mxu0 0.0
    %507 = vmatpush1.msra.mxu0 %v391
    %508 = vmatprep.subr.mxu0 0.0
    %509 = vmatpush1.msra.mxu0 %v394
    %510 = vmatprep.subr.mxu0 0.0
    %511 = vmatpush1.msra.mxu0 %v397
    %512 = vmatprep.subr.mxu0 0.0
    %513 = vmatpush1.msra.mxu0 %v400
    %514 = vmatprep.subr.mxu0 0.0
    %515 = vmatpush1.msra.mxu0 %v403
    %516 = vmatprep.subr.mxu0 0.0
    %517 = vmatpush1.msra.mxu0 %v406
    %518 = vmatprep.subr.mxu0 0.0
    %519 = vmatpush1.msra.mxu0 %v409
    %520 = vmatprep.subr.mxu0 0.0
    %521 = vmatpush1.msra.mxu0 %v412
    %522 = vmatprep.subr.mxu0 0.0
    %523 = vmatpush1.msra.mxu0 %v415
    %524 = vmatprep.subr.mxu0 0.0
    %525 = vmatpush1.msra.mxu0 %v418
    %526 = vmatprep.subr.mxu0 0.0
    %527 = vmatpush1.msra.mxu0 %v421
    %528 = vmatprep.subr.mxu0 0.0
    %529 = vmatpush1.msra.mxu0 %v424
    %530 = vmatprep.subr.mxu0 0.0
    %531 = vmatpush1.msra.mxu0 %v427
    %532 = vmatprep.subr.mxu0 0.0
    %533 = vmatpush1.msra.mxu0 %v430
    %534 = vmatprep.subr.mxu0 0.0
    %535 = vmatpush1.msra.mxu0 0.0
    %536 = vmatprep.subr.mxu0 0.0
    %537 = vmatpush1.msra.mxu0 0.0
    %538 = vmatprep.subr.mxu0 0.0
    %539 = vmatpush1.msra.mxu0 0.0
    %540 = vmatprep.subr.mxu0 0.0
    %541 = vmatpush1.msra.mxu0 0.0
    %542 = vmatprep.subr.mxu0 0.0
    %543 = vmatpush1.msra.mxu0 0.0
    %544 = vmatprep.subr.mxu0 0.0
    %545 = vmatpush1.msra.mxu0 0.0
    %546 = vmatprep.subr.mxu0 0.0
    %547 = vmatpush1.msra.mxu0 0.0
    %548 = vmatprep.subr.mxu0 0.0
    %549 = vmatpush1.msra.mxu0 0.0
    %550 = vmatprep.subr.mxu0 0.0
    %551 = vmatpush1.msra.mxu0 0.0
    %552 = vmatprep.subr.mxu0 0.0
    %553 = vmatpush1.msra.mxu0 0.0
    %554 = vmatprep.subr.mxu0 0.0
    %555 = vmatpush1.msra.mxu0 0.0
    %556 = vmatprep.subr.mxu0 0.0
    %557 = vmatpush1.msra.mxu0 0.0
    %558 = vmatprep.subr.mxu0 0.0
    %559 = vmatpush1.msra.mxu0 0.0
    %560 = vmatprep.subr.mxu0 0.0
    %561 = vmatpush1.msra.mxu0 0.0
    %562 = vmatprep.subr.mxu0 0.0
    %563 = vmatpush1.msra.mxu0 0.0
    %564 = vmatprep.subr.mxu0 0.0
    %565 = vmatpush1.msra.mxu0 0.0
    %566 = vmatprep.mubr.f32.mxu0 0.0
    %567 = vmatmul.mubr.f32.gmra.mrb[0].mxu0 0.0
    %v568 = vpop.f32.mrb[0].mxu0
    %v569 = vadd.f32 0.0, %v568
    %v570 = vpop.f32.mrb[0].mxu0
    %571 = vdwg.mxu0
    %v572 = vadd.f32 %v380, %v498
    %v573 = vadd.f32 %v381, %v500
    %v574 = vmul.f32 %v572, 0.5
    %v575 = vmul.f32 %v573, 0.5
    %v576 = vtanh.pop %v574
    %v577 = vtanh.pop %v575
    %v578 = vmul.f32 %v576, 0.5
    %v579 = vmul.f32 %v577, 0.5
    %v580 = vadd.f32 %v578, 0.5
    %v581 = vadd.f32 %v579, 0.5
    %v582 = vadd.f32 %v569, %v378
    %v583 = vmul.f32 %v580, %v582
    %v584 = vadd.f32 %v382, %v583
    %v585 = vtanh.pop %v584
    %v586 = vsub.f32 0.0, %v585
    %v587 = vmul.f32 %v581, %v586
    %v588 = vadd.f32 %v585, %v587
    %v589 = vld [vmem:[#allocation2 + $0x18] sm:$0xff]
    %v590 = vld [vmem:[#allocation2 + $0x20] sm:$0xff]
    %v591 = vld [vmem:[#allocation2 + $0x28] sm:$0xff]
    %592 = vmatprep.subr.mxu0 %v384
    %593 = vmatpush1.msra.mxu0 %v383
    %594 = vmatprep.subr.mxu0 %v387
    %595 = vmatpush1.msra.mxu0 %v386
    %596 = vmatprep.subr.mxu0 %v390
    %597 = vmatpush1.msra.mxu0 %v389
    %598 = vmatprep.subr.mxu0 %v393
    %599 = vmatpush1.msra.mxu0 %v392
    %600 = vmatprep.subr.mxu0 %v396
    %601 = vmatpush1.msra.mxu0 %v395
    %602 = vmatprep.subr.mxu0 %v399
    %603 = vmatpush1.msra.mxu0 %v398
    %604 = vmatprep.subr.mxu0 %v402
    %605 = vmatpush1.msra.mxu0 %v401
    %606 = vmatprep.subr.mxu0 %v405
    %607 = vmatpush1.msra.mxu0 %v404
    %608 = vmatprep.subr.mxu0 %v408
    %609 = vmatpush1.msra.mxu0 %v407
    %610 = vmatprep.subr.mxu0 %v411
    %611 = vmatpush1.msra.mxu0 %v410
    %612 = vmatprep.subr.mxu0 %v414
    %613 = vmatpush1.msra.mxu0 %v413
    %614 = vmatprep.subr.mxu0 %v417
    %615 = vmatpush1.msra.mxu0 %v416
    %616 = vmatprep.subr.mxu0 %v420
    %617 = vmatpush1.msra.mxu0 %v419
    %618 = vmatprep.subr.mxu0 %v423
    %619 = vmatpush1.msra.mxu0 %v422
    %620 = vmatprep.subr.mxu0 %v426
    %621 = vmatpush1.msra.mxu0 %v425
    %622 = vmatprep.subr.mxu0 %v429
    %623 = vmatpush1.msra.mxu0 %v428
    %624 = vmatprep.subr.mxu0 0.0
    %625 = vmatpush1.msra.mxu0 0.0
    %626 = vmatprep.subr.mxu0 0.0
    %627 = vmatpush1.msra.mxu0 0.0
    %628 = vmatprep.subr.mxu0 0.0
    %629 = vmatpush1.msra.mxu0 0.0
    %630 = vmatprep.subr.mxu0 0.0
    %631 = vmatpush1.msra.mxu0 0.0
    %632 = vmatprep.subr.mxu0 0.0
    %633 = vmatpush1.msra.mxu0 0.0
    %634 = vmatprep.subr.mxu0 0.0
    %635 = vmatpush1.msra.mxu0 0.0
    %636 = vmatprep.subr.mxu0 0.0
    %637 = vmatpush1.msra.mxu0 0.0
    %638 = vmatprep.subr.mxu0 0.0
    %639 = vmatpush1.msra.mxu0 0.0
    %640 = vmatprep.subr.mxu0 0.0
    %641 = vmatpush1.msra.mxu0 0.0
    %642 = vmatprep.subr.mxu0 0.0
    %643 = vmatpush1.msra.mxu0 0.0
    %644 = vmatprep.subr.mxu0 0.0
    %645 = vmatpush1.msra.mxu0 0.0
    %646 = vmatprep.subr.mxu0 0.0
    %647 = vmatpush1.msra.mxu0 0.0
    %648 = vmatprep.subr.mxu0 0.0
    %649 = vmatpush1.msra.mxu0 0.0
    %650 = vmatprep.subr.mxu0 0.0
    %651 = vmatpush1.msra.mxu0 0.0
    %652 = vmatprep.subr.mxu0 0.0
    %653 = vmatpush1.msra.mxu0 0.0
    %654 = vmatprep.subr.mxu0 0.0
    %655 = vmatpush1.msra.mxu0 0.0
    %656 = vmatprep.mubr.f32.mxu0 0.0
    %657 = vmatmul.mubr.f32.gmra.mrb[0].mxu0 %v588
    %v658 = vpop.f32.mrb[0].mxu0
    %v659 = vadd.f32 0.0, %v658
    %v660 = vpop.f32.mrb[0].mxu0
    %v661 = vadd.f32 0.0, %v660
    %662 = vdwg.mxu0
    %663 = vmatprep.subr.mxu0 0.0
    %664 = vmatpush1.msra.mxu0 %v385
    %665 = vmatprep.subr.mxu0 0.0
    %666 = vmatpush1.msra.mxu0 %v388
    %667 = vmatprep.subr.mxu0 0.0
    %668 = vmatpush1.msra.mxu0 %v391
    %669 = vmatprep.subr.mxu0 0.0
    %670 = vmatpush1.msra.mxu0 %v394
    %671 = vmatprep.subr.mxu0 0.0
    %672 = vmatpush1.msra.mxu0 %v397
    %673 = vmatprep.subr.mxu0 0.0
    %674 = vmatpush1.msra.mxu0 %v400
    %675 = vmatprep.subr.mxu0 0.0
    %676 = vmatpush1.msra.mxu0 %v403
    %677 = vmatprep.subr.mxu0 0.0
    %678 = vmatpush1.msra.mxu0 %v406
    %679 = vmatprep.subr.mxu0 0.0
    %680 = vmatpush1.msra.mxu0 %v409
    %681 = vmatprep.subr.mxu0 0.0
    %682 = vmatpush1.msra.mxu0 %v412
    %683 = vmatprep.subr.mxu0 0.0
    %684 = vmatpush1.msra.mxu0 %v415
    %685 = vmatprep.subr.mxu0 0.0
    %686 = vmatpush1.msra.mxu0 %v418
    %687 = vmatprep.subr.mxu0 0.0
    %688 = vmatpush1.msra.mxu0 %v421
    %689 = vmatprep.subr.mxu0 0.0
    %690 = vmatpush1.msra.mxu0 %v424
    %691 = vmatprep.subr.mxu0 0.0
    %692 = vmatpush1.msra.mxu0 %v427
    %693 = vmatprep.subr.mxu0 0.0
    %694 = vmatpush1.msra.mxu0 %v430
    %695 = vmatprep.subr.mxu0 0.0
    %696 = vmatpush1.msra.mxu0 0.0
    %697 = vmatprep.subr.mxu0 0.0
    %698 = vmatpush1.msra.mxu0 0.0
    %699 = vmatprep.subr.mxu0 0.0
    %700 = vmatpush1.msra.mxu0 0.0
    %701 = vmatprep.subr.mxu0 0.0
    %702 = vmatpush1.msra.mxu0 0.0
    %703 = vmatprep.subr.mxu0 0.0
    %704 = vmatpush1.msra.mxu0 0.0
    %705 = vmatprep.subr.mxu0 0.0
    %706 = vmatpush1.msra.mxu0 0.0
    %707 = vmatprep.subr.mxu0 0.0
    %708 = vmatpush1.msra.mxu0 0.0
    %709 = vmatprep.subr.mxu0 0.0
    %710 = vmatpush1.msra.mxu0 0.0
    %711 = vmatprep.subr.mxu0 0.0
    %712 = vmatpush1.msra.mxu0 0.0
    %713 = vmatprep.subr.mxu0 0.0
    %714 = vmatpush1.msra.mxu0 0.0
    %715 = vmatprep.subr.mxu0 0.0
    %716 = vmatpush1.msra.mxu0 0.0
    %717 = vmatprep.subr.mxu0 0.0
    %718 = vmatpush1.msra.mxu0 0.0
    %719 = vmatprep.subr.mxu0 0.0
    %720 = vmatpush1.msra.mxu0 0.0
    %721 = vmatprep.subr.mxu0 0.0
    %722 = vmatpush1.msra.mxu0 0.0
    %723 = vmatprep.subr.mxu0 0.0
    %724 = vmatpush1.msra.mxu0 0.0
    %725 = vmatprep.subr.mxu0 0.0
    %726 = vmatpush1.msra.mxu0 0.0
    %727 = vmatprep.mubr.f32.mxu0 0.0
    %728 = vmatmul.mubr.f32.gmra.mrb[0].mxu0 %v588
    %v729 = vpop.f32.mrb[0].mxu0
    %v730 = vadd.f32 0.0, %v729
    %v731 = vpop.f32.mrb[0].mxu0
    %732 = vdwg.mxu0
    %v733 = vadd.f32 %v589, %v659
    %v734 = vadd.f32 %v590, %v661
    %v735 = vmul.f32 %v733, 0.5
    %v736 = vmul.f32 %v734, 0.5
    %v737 = vtanh.pop %v735
    %v738 = vtanh.pop %v736
    %v739 = vmul.f32 %v737, 0.5
    %v740 = vmul.f32 %v738, 0.5
    %v741 = vadd.f32 %v739, 0.5
    %v742 = vadd.f32 %v740, 0.5
    %v743 = vadd.f32 %v730, %v378
    %v744 = vmul.f32 %v741, %v743
    %v745 = vadd.f32 %v591, %v744
    %v746 = vtanh.pop %v745
    %v747 = vsub.f32 %v588, %v746
    %v748 = vmul.f32 %v742, %v747
    %v749 = vadd.f32 %v746, %v748
    %v750 = vld [vmem:[#allocation2 + $0x30] sm:$0xff]
    %v751 = vld [vmem:[#allocation2 + $0x38] sm:$0xff]
    %v752 = vld [vmem:[#allocation2 + $0x40] sm:$0xff]
    %753 = vmatprep.subr.mxu0 %v384
    %754 = vmatpush1.msra.mxu0 %v383
    %755 = vmatprep.subr.mxu0 %v387
    %756 = vmatpush1.msra.mxu0 %v386
    %757 = vmatprep.subr.mxu0 %v390
    %758 = vmatpush1.msra.mxu0 %v389
    %759 = vmatprep.subr.mxu0 %v393
    %760 = vmatpush1.msra.mxu0 %v392
    %761 = vmatprep.subr.mxu0 %v396
    %762 = vmatpush1.msra.mxu0 %v395
    %763 = vmatprep.subr.mxu0 %v399
    %764 = vmatpush1.msra.mxu0 %v398
    %765 = vmatprep.subr.mxu0 %v402
    %766 = vmatpush1.msra.mxu0 %v401
    %767 = vmatprep.subr.mxu0 %v405
    %768 = vmatpush1.msra.mxu0 %v404
    %769 = vmatprep.subr.mxu0 %v408
    %770 = vmatpush1.msra.mxu0 %v407
    %771 = vmatprep.subr.mxu0 %v411
    %772 = vmatpush1.msra.mxu0 %v410
    %773 = vmatprep.subr.mxu0 %v414
    %774 = vmatpush1.msra.mxu0 %v413
    %775 = vmatprep.subr.mxu0 %v417
    %776 = vmatpush1.msra.mxu0 %v416
    %777 = vmatprep.subr.mxu0 %v420
    %778 = vmatpush1.msra.mxu0 %v419
    %779 = vmatprep.subr.mxu0 %v423
    %780 = vmatpush1.msra.mxu0 %v422
    %781 = vmatprep.subr.mxu0 %v426
    %782 = vmatpush1.msra.mxu0 %v425
    %783 = vmatprep.subr.mxu0 %v429
    %784 = vmatpush1.msra.mxu0 %v428
    %785 = vmatprep.subr.mxu0 0.0
    %786 = vmatpush1.msra.mxu0 0.0
    %787 = vmatprep.subr.mxu0 0.0
    %788 = vmatpush1.msra.mxu0 0.0
    %789 = vmatprep.subr.mxu0 0.0
    %790 = vmatpush1.msra.mxu0 0.0
    %791 = vmatprep.subr.mxu0 0.0
    %792 = vmatpush1.msra.mxu0 0.0
    %793 = vmatprep.subr.mxu0 0.0
    %794 = vmatpush1.msra.mxu0 0.0
    %795 = vmatprep.subr.mxu0 0.0
    %796 = vmatpush1.msra.mxu0 0.0
    %797 = vmatprep.subr.mxu0 0.0
    %798 = vmatpush1.msra.mxu0 0.0
    %799 = vmatprep.subr.mxu0 0.0
    %800 = vmatpush1.msra.mxu0 0.0
    %801 = vmatprep.subr.mxu0 0.0
    %802 = vmatpush1.msra.mxu0 0.0
    %803 = vmatprep.subr.mxu0 0.0
    %804 = vmatpush1.msra.mxu0 0.0
    %805 = vmatprep.subr.mxu0 0.0
    %806 = vmatpush1.msra.mxu0 0.0
    %807 = vmatprep.subr.mxu0 0.0
    %808 = vmatpush1.msra.mxu0 0.0
    %809 = vmatprep.subr.mxu0 0.0
    %810 = vmatpush1.msra.mxu0 0.0
    %811 = vmatprep.subr.mxu0 0.0
    %812 = vmatpush1.msra.mxu0 0.0
    %813 = vmatprep.subr.mxu0 0.0
    %814 = vmatpush1.msra.mxu0 0.0
    %815 = vmatprep.subr.mxu0 0.0
    %816 = vmatpush1.msra.mxu0 0.0
    %817 = vmatprep.mubr.f32.mxu0 0.0
    %818 = vmatmul.mubr.f32.gmra.mrb[0].mxu0 %v749
    %v819 = vpop.f32.mrb[0].mxu0
    %v820 = vadd.f32 0.0, %v819
    %v821 = vpop.f32.mrb[0].mxu0
    %v822 = vadd.f32 0.0, %v821
    %823 = vdwg.mxu0
    %824 = vmatprep.subr.mxu0 0.0
    %825 = vmatpush1.msra.mxu0 %v385
    %826 = vmatprep.subr.mxu0 0.0
    %827 = vmatpush1.msra.mxu0 %v388
    %828 = vmatprep.subr.mxu0 0.0
    %829 = vmatpush1.msra.mxu0 %v391
    %830 = vmatprep.subr.mxu0 0.0
    %831 = vmatpush1.msra.mxu0 %v394
    %832 = vmatprep.subr.mxu0 0.0
    %833 = vmatpush1.msra.mxu0 %v397
    %834 = vmatprep.subr.mxu0 0.0
    %835 = vmatpush1.msra.mxu0 %v400
    %836 = vmatprep.subr.mxu0 0.0
    %837 = vmatpush1.msra.mxu0 %v403
    %838 = vmatprep.subr.mxu0 0.0
    %839 = vmatpush1.msra.mxu0 %v406
    %840 = vmatprep.subr.mxu0 0.0
    %841 = vmatpush1.msra.mxu0 %v409
    %842 = vmatprep.subr.mxu0 0.0
    %843 = vmatpush1.msra.mxu0 %v412
    %844 = vmatprep.subr.mxu0 0.0
    %845 = vmatpush1.msra.mxu0 %v415
    %846 = vmatprep.subr.mxu0 0.0
    %847 = vmatpush1.msra.mxu0 %v418
    %848 = vmatprep.subr.mxu0 0.0
    %849 = vmatpush1.msra.mxu0 %v421
    %850 = vmatprep.subr.mxu0 0.0
    %851 = vmatpush1.msra.mxu0 %v424
    %852 = vmatprep.subr.mxu0 0.0
    %853 = vmatpush1.msra.mxu0 %v427
    %854 = vmatprep.subr.mxu0 0.0
    %855 = vmatpush1.msra.mxu0 %v430
    %856 = vmatprep.subr.mxu0 0.0
    %857 = vmatpush1.msra.mxu0 0.0
    %858 = vmatprep.subr.mxu0 0.0
    %859 = vmatpush1.msra.mxu0 0.0
    %860 = vmatprep.subr.mxu0 0.0
    %861 = vmatpush1.msra.mxu0 0.0
    %862 = vmatprep.subr.mxu0 0.0
    %863 = vmatpush1.msra.mxu0 0.0
    %864 = vmatprep.subr.mxu0 0.0
    %865 = vmatpush1.msra.mxu0 0.0
    %866 = vmatprep.subr.mxu0 0.0
    %867 = vmatpush1.msra.mxu0 0.0
    %868 = vmatprep.subr.mxu0 0.0
    %869 = vmatpush1.msra.mxu0 0.0
    %870 = vmatprep.subr.mxu0 0.0
    %871 = vmatpush1.msra.mxu0 0.0
    %872 = vmatprep.subr.mxu0 0.0
    %873 = vmatpush1.msra.mxu0 0.0
    %874 = vmatprep.subr.mxu0 0.0
    %875 = vmatpush1.msra.mxu0 0.0
    %876 = vmatprep.subr.mxu0 0.0
    %877 = vmatpush1.msra.mxu0 0.0
    %878 = vmatprep.subr.mxu0 0.0
    %879 = vmatpush1.msra.mxu0 0.0
    %880 = vmatprep.subr.mxu0 0.0
    %881 = vmatpush1.msra.mxu0 0.0
    %882 = vmatprep.subr.mxu0 0.0
    %883 = vmatpush1.msra.mxu0 0.0
    %884 = vmatprep.subr.mxu0 0.0
    %885 = vmatpush1.msra.mxu0 0.0
    %886 = vmatprep.subr.mxu0 0.0
    %887 = vmatpush1.msra.mxu0 0.0
    %888 = vmatprep.mubr.f32.mxu0 0.0
    %889 = vmatmul.mubr.f32.gmra.mrb[0].mxu0 %v749
    %v890 = vpop.f32.mrb[0].mxu0
    %v891 = vadd.f32 0.0, %v890
    %v892 = vpop.f32.mrb[0].mxu0
    %893 = vdwg.mxu0
    %v894 = vadd.f32 %v750, %v820
    %v895 = vadd.f32 %v751, %v822
    %v896 = vmul.f32 %v894, 0.5
    %v897 = vmul.f32 %v895, 0.5
    %v898 = vtanh.pop %v896
    %v899 = vtanh.pop %v897
    %v900 = vmul.f32 %v898, 0.5
    %v901 = vmul.f32 %v899, 0.5
    %v902 = vadd.f32 %v900, 0.5
    %v903 = vadd.f32 %v901, 0.5
    %v904 = vadd.f32 %v891, %v378
    %v905 = vmul.f32 %v902, %v904
    %v906 = vadd.f32 %v752, %v905
    %v907 = vtanh.pop %v906
    %v908 = vsub.f32 %v749, %v907
    %v909 = vmul.f32 %v903, %v908
    %v910 = vadd.f32 %v907, %v909
    %v911 = vld [vmem:[#allocation2 + $0x48] sm:$0xff]
    %v912 = vld [vmem:[#allocation2 + $0x50] sm:$0xff]
    %v913 = vld [vmem:[#allocation2 + $0x58] sm:$0xff]
    %914 = vmatprep.subr.mxu0 %v384
    %915 = vmatpush1.msra.mxu0 %v383
    %916 = vmatprep.subr.mxu0 %v387
    %917 = vmatpush1.msra.mxu0 %v386
    %918 = vmatprep.subr.mxu0 %v390
    %919 = vmatpush1.msra.mxu0 %v389
    %920 = vmatprep.subr.mxu0 %v393
    %921 = vmatpush1.msra.mxu0 %v392
    %922 = vmatprep.subr.mxu0 %v396
    %923 = vmatpush1.msra.mxu0 %v395
    %924 = vmatprep.subr.mxu0 %v399
    %925 = vmatpush1.msra.mxu0 %v398
    %926 = vmatprep.subr.mxu0 %v402
    %927 = vmatpush1.msra.mxu0 %v401
    %928 = vmatprep.subr.mxu0 %v405
    %929 = vmatpush1.msra.mxu0 %v404
    %930 = vmatprep.subr.mxu0 %v408
    %931 = vmatpush1.msra.mxu0 %v407
    %932 = vmatprep.subr.mxu0 %v411
    %933 = vmatpush1.msra.mxu0 %v410
    %934 = vmatprep.subr.mxu0 %v414
    %935 = vmatpush1.msra.mxu0 %v413
    %936 = vmatprep.subr.mxu0 %v417
    %937 = vmatpush1.msra.mxu0 %v416
    %938 = vmatprep.subr.mxu0 %v420
    %939 = vmatpush1.msra.mxu0 %v419
    %940 = vmatprep.subr.mxu0 %v423
    %941 = vmatpush1.msra.mxu0 %v422
    %942 = vmatprep.subr.mxu0 %v426
    %943 = vmatpush1.msra.mxu0 %v425
    %944 = vmatprep.subr.mxu0 %v429
    %945 = vmatpush1.msra.mxu0 %v428
    %946 = vmatprep.subr.mxu0 0.0
    %947 = vmatpush1.msra.mxu0 0.0
    %948 = vmatprep.subr.mxu0 0.0
    %949 = vmatpush1.msra.mxu0 0.0
    %950 = vmatprep.subr.mxu0 0.0
    %951 = vmatpush1.msra.mxu0 0.0
    %952 = vmatprep.subr.mxu0 0.0
    %953 = vmatpush1.msra.mxu0 0.0
    %954 = vmatprep.subr.mxu0 0.0
    %955 = vmatpush1.msra.mxu0 0.0
    %956 = vmatprep.subr.mxu0 0.0
    %957 = vmatpush1.msra.mxu0 0.0
    %958 = vmatprep.subr.mxu0 0.0
    %959 = vmatpush1.msra.mxu0 0.0
    %960 = vmatprep.subr.mxu0 0.0
    %961 = vmatpush1.msra.mxu0 0.0
    %962 = vmatprep.subr.mxu0 0.0
    %963 = vmatpush1.msra.mxu0 0.0
    %964 = vmatprep.subr.mxu0 0.0
    %965 = vmatpush1.msra.mxu0 0.0
    %966 = vmatprep.subr.mxu0 0.0
    %967 = vmatpush1.msra.mxu0 0.0
    %968 = vmatprep.subr.mxu0 0.0
    %969 = vmatpush1.msra.mxu0 0.0
    %970 = vmatprep.subr.mxu0 0.0
    %971 = vmatpush1.msra.mxu0 0.0
    %972 = vmatprep.subr.mxu0 0.0
    %973 = vmatpush1.msra.mxu0 0.0
    %974 = vmatprep.subr.mxu0 0.0
    %975 = vmatpush1.msra.mxu0 0.0
    %976 = vmatprep.subr.mxu0 0.0
    %977 = vmatpush1.msra.mxu0 0.0
    %978 = vmatprep.mubr.f32.mxu0 0.0
    %979 = vmatmul.mubr.f32.gmra.mrb[0].mxu0 %v910
    %v980 = vpop.f32.mrb[0].mxu0
    %v981 = vadd.f32 0.0, %v980
    %v982 = vpop.f32.mrb[0].mxu0
    %v983 = vadd.f32 0.0, %v982
    %984 = vdwg.mxu0
    %985 = vmatprep.subr.mxu0 0.0
    %986 = vmatpush1.msra.mxu0 %v385
    %987 = vmatprep.subr.mxu0 0.0
    %988 = vmatpush1.msra.mxu0 %v388
    %989 = vmatprep.subr.mxu0 0.0
    %990 = vmatpush1.msra.mxu0 %v391
    %991 = vmatprep.subr.mxu0 0.0
    %992 = vmatpush1.msra.mxu0 %v394
    %993 = vmatprep.subr.mxu0 0.0
    %994 = vmatpush1.msra.mxu0 %v397
    %995 = vmatprep.subr.mxu0 0.0
    %996 = vmatpush1.msra.mxu0 %v400
    %997 = vmatprep.subr.mxu0 0.0
    %998 = vmatpush1.msra.mxu0 %v403
    %999 = vmatprep.subr.mxu0 0.0
    %1000 = vmatpush1.msra.mxu0 %v406
    %1001 = vmatprep.subr.mxu0 0.0
    %1002 = vmatpush1.msra.mxu0 %v409
    %1003 = vmatprep.subr.mxu0 0.0
    %1004 = vmatpush1.msra.mxu0 %v412
    %1005 = vmatprep.subr.mxu0 0.0
    %1006 = vmatpush1.msra.mxu0 %v415
    %1007 = vmatprep.subr.mxu0 0.0
    %1008 = vmatpush1.msra.mxu0 %v418
    %1009 = vmatprep.subr.mxu0 0.0
    %1010 = vmatpush1.msra.mxu0 %v421
    %1011 = vmatprep.subr.mxu0 0.0
    %1012 = vmatpush1.msra.mxu0 %v424
    %1013 = vmatprep.subr.mxu0 0.0
    %1014 = vmatpush1.msra.mxu0 %v427
    %1015 = vmatprep.subr.mxu0 0.0
    %1016 = vmatpush1.msra.mxu0 %v430
    %1017 = vmatprep.subr.mxu0 0.0
    %1018 = vmatpush1.msra.mxu0 0.0
    %1019 = vmatprep.subr.mxu0 0.0
    %1020 = vmatpush1.msra.mxu0 0.0
    %1021 = vmatprep.subr.mxu0 0.0
    %1022 = vmatpush1.msra.mxu0 0.0
    %1023 = vmatprep.subr.mxu0 0.0
    %1024 = vmatpush1.msra.mxu0 0.0
    %1025 = vmatprep.subr.mxu0 0.0
    %1026 = vmatpush1.msra.mxu0 0.0
    %1027 = vmatprep.subr.mxu0 0.0
    %1028 = vmatpush1.msra.mxu0 0.0
    %1029 = vmatprep.subr.mxu0 0.0
    %1030 = vmatpush1.msra.mxu0 0.0
    %1031 = vmatprep.subr.mxu0 0.0
    %1032 = vmatpush1.msra.mxu0 0.0
    %1033 = vmatprep.subr.mxu0 0.0
    %1034 = vmatpush1.msra.mxu0 0.0
    %1035 = vmatprep.subr.mxu0 0.0
    %1036 = vmatpush1.msra.mxu0 0.0
    %1037 = vmatprep.subr.mxu0 0.0
    %1038 = vmatpush1.msra.mxu0 0.0
    %1039 = vmatprep.subr.mxu0 0.0
    %1040 = vmatpush1.msra.mxu0 0.0
    %1041 = vmatprep.subr.mxu0 0.0
    %1042 = vmatpush1.msra.mxu0 0.0
    %1043 = vmatprep.subr.mxu0 0.0
    %1044 = vmatpush1.msra.mxu0 0.0
    %1045 = vmatprep.subr.mxu0 0.0
    %1046 = vmatpush1.msra.mxu0 0.0
    %1047 = vmatprep.subr.mxu0 0.0
    %1048 = vmatpush1.msra.mxu0 0.0
    %1049 = vmatprep.mubr.f32.mxu0 0.0
    %1050 = vmatmul.mubr.f32.gmra.mrb[0].mxu0 %v910
    %v1051 = vpop.f32.mrb[0].mxu0
    %v1052 = vadd.f32 0.0, %v1051
    %v1053 = vpop.f32.mrb[0].mxu0
    %1054 = vdwg.mxu0
    %v1055 = vadd.f32 %v911, %v981
    %v1056 = vadd.f32 %v912, %v983
    %v1057 = vmul.f32 %v1055, 0.5
    %v1058 = vmul.f32 %v1056, 0.5
    %v1059 = vtanh.pop %v1057
    %v1060 = vtanh.pop %v1058
    %v1061 = vmul.f32 %v1059, 0.5
    %v1062 = vmul.f32 %v1060, 0.5
    %v1063 = vadd.f32 %v1061, 0.5
    %v1064 = vadd.f32 %v1062, 0.5
    %v1065 = vadd.f32 %v1052, %v378
    %v1066 = vmul.f32 %v1063, %v1065
    %v1067 = vadd.f32 %v913, %v1066
    %v1068 = vtanh.pop %v1067
    %v1069 = vsub.f32 %v910, %v1068
    %v1070 = vmul.f32 %v1064, %v1069
    %v1071 = vadd.f32 %v1068, %v1070
    %v1072 = vld [vmem:[#allocation2 + $0x60] sm:$0xff]
    %v1073 = vld [vmem:[#allocation2 + $0x68] sm:$0xff]
    %v1074 = vld [vmem:[#allocation2 + $0x70] sm:$0xff]
    %1075 = vmatprep.subr.mxu0 %v384
    %1076 = vmatpush1.msra.mxu0 %v383
    %1077 = vmatprep.subr.mxu0 %v387
    %1078 = vmatpush1.msra.mxu0 %v386
    %1079 = vmatprep.subr.mxu0 %v390
    %1080 = vmatpush1.msra.mxu0 %v389
    %1081 = vmatprep.subr.mxu0 %v393
    %1082 = vmatpush1.msra.mxu0 %v392
    %1083 = vmatprep.subr.mxu0 %v396
    %1084 = vmatpush1.msra.mxu0 %v395
    %1085 = vmatprep.subr.mxu0 %v399
    %1086 = vmatpush1.msra.mxu0 %v398
    %1087 = vmatprep.subr.mxu0 %v402
    %1088 = vmatpush1.msra.mxu0 %v401
    %1089 = vmatprep.subr.mxu0 %v405
    %1090 = vmatpush1.msra.mxu0 %v404
    %1091 = vmatprep.subr.mxu0 %v408
    %1092 = vmatpush1.msra.mxu0 %v407
    %1093 = vmatprep.subr.mxu0 %v411
    %1094 = vmatpush1.msra.mxu0 %v410
    %1095 = vmatprep.subr.mxu0 %v414
    %1096 = vmatpush1.msra.mxu0 %v413
    %1097 = vmatprep.subr.mxu0 %v417
    %1098 = vmatpush1.msra.mxu0 %v416
    %1099 = vmatprep.subr.mxu0 %v420
    %1100 = vmatpush1.msra.mxu0 %v419
    %1101 = vmatprep.subr.mxu0 %v423
    %1102 = vmatpush1.msra.mxu0 %v422
    %1103 = vmatprep.subr.mxu0 %v426
    %1104 = vmatpush1.msra.mxu0 %v425
    %1105 = vmatprep.subr.mxu0 %v429
    %1106 = vmatpush1.msra.mxu0 %v428
    %1107 = vmatprep.subr.mxu0 0.0
    %1108 = vmatpush1.msra.mxu0 0.0
    %1109 = vmatprep.subr.mxu0 0.0
    %1110 = vmatpush1.msra.mxu0 0.0
    %1111 = vmatprep.subr.mxu0 0.0
    %1112 = vmatpush1.msra.mxu0 0.0
    %1113 = vmatprep.subr.mxu0 0.0
    %1114 = vmatpush1.msra.mxu0 0.0
    %1115 = vmatprep.subr.mxu0 0.0
    %1116 = vmatpush1.msra.mxu0 0.0
    %1117 = vmatprep.subr.mxu0 0.0
    %1118 = vmatpush1.msra.mxu0 0.0
    %1119 = vmatprep.subr.mxu0 0.0
    %1120 = vmatpush1.msra.mxu0 0.0
    %1121 = vmatprep.subr.mxu0 0.0
    %1122 = vmatpush1.msra.mxu0 0.0
    %1123 = vmatprep.subr.mxu0 0.0
    %1124 = vmatpush1.msra.mxu0 0.0
    %1125 = vmatprep.subr.mxu0 0.0
    %1126 = vmatpush1.msra.mxu0 0.0
    %1127 = vmatprep.subr.mxu0 0.0
    %1128 = vmatpush1.msra.mxu0 0.0
    %1129 = vmatprep.subr.mxu0 0.0
    %1130 = vmatpush1.msra.mxu0 0.0
    %1131 = vmatprep.subr.mxu0 0.0
    %1132 = vmatpush1.msra.mxu0 0.0
    %1133 = vmatprep.subr.mxu0 0.0
    %1134 = vmatpush1.msra.mxu0 0.0
    %1135 = vmatprep.subr.mxu0 0.0
    %1136 = vmatpush1.msra.mxu0 0.0
    %1137 = vmatprep.subr.mxu0 0.0
    %1138 = vmatpush1.msra.mxu0 0.0
    %1139 = vmatprep.mubr.f32.mxu0 0.0
    %1140 = vmatmul.mubr.f32.gmra.mrb[0].mxu0 %v1071
    %v1141 = vpop.f32.mrb[0].mxu0
    %v1142 = vadd.f32 0.0, %v1141
    %v1143 = vpop.f32.mrb[0].mxu0
    %v1144 = vadd.f32 0.0, %v1143
    %1145 = vdwg.mxu0
    %1146 = vmatprep.subr.mxu0 0.0
    %1147 = vmatpush1.msra.mxu0 %v385
    %1148 = vmatprep.subr.mxu0 0.0
    %1149 = vmatpush1.msra.mxu0 %v388
    %1150 = vmatprep.subr.mxu0 0.0
    %1151 = vmatpush1.msra.mxu0 %v391
    %1152 = vmatprep.subr.mxu0 0.0
    %1153 = vmatpush1.msra.mxu0 %v394
    %1154 = vmatprep.subr.mxu0 0.0
    %1155 = vmatpush1.msra.mxu0 %v397
    %1156 = vmatprep.subr.mxu0 0.0
    %1157 = vmatpush1.msra.mxu0 %v400
    %1158 = vmatprep.subr.mxu0 0.0
    %1159 = vmatpush1.msra.mxu0 %v403
    %1160 = vmatprep.subr.mxu0 0.0
    %1161 = vmatpush1.msra.mxu0 %v406
    %1162 = vmatprep.subr.mxu0 0.0
    %1163 = vmatpush1.msra.mxu0 %v409
    %1164 = vmatprep.subr.mxu0 0.0
    %1165 = vmatpush1.msra.mxu0 %v412
    %1166 = vmatprep.subr.mxu0 0.0
    %1167 = vmatpush1.msra.mxu0 %v415
    %1168 = vmatprep.subr.mxu0 0.0
    %1169 = vmatpush1.msra.mxu0 %v418
    %1170 = vmatprep.subr.mxu0 0.0
    %1171 = vmatpush1.msra.mxu0 %v421
    %1172 = vmatprep.subr.mxu0 0.0
    %1173 = vmatpush1.msra.mxu0 %v424
    %1174 = vmatprep.subr.mxu0 0.0
    %1175 = vmatpush1.msra.mxu0 %v427
    %1176 = vmatprep.subr.mxu0 0.0
    %1177 = vmatpush1.msra.mxu0 %v430
    %1178 = vmatprep.subr.mxu0 0.0
    %1179 = vmatpush1.msra.mxu0 0.0
    %1180 = vmatprep.subr.mxu0 0.0
    %1181 = vmatpush1.msra.mxu0 0.0
    %1182 = vmatprep.subr.mxu0 0.0
    %1183 = vmatpush1.msra.mxu0 0.0
    %1184 = vmatprep.subr.mxu0 0.0
    %1185 = vmatpush1.msra.mxu0 0.0
    %1186 = vmatprep.subr.mxu0 0.0
    %1187 = vmatpush1.msra.mxu0 0.0
    %1188 = vmatprep.subr.mxu0 0.0
    %1189 = vmatpush1.msra.mxu0 0.0
    %1190 = vmatprep.subr.mxu0 0.0
    %1191 = vmatpush1.msra.mxu0 0.0
    %1192 = vmatprep.subr.mxu0 0.0
    %1193 = vmatpush1.msra.mxu0 0.0
    %1194 = vmatprep.subr.mxu0 0.0
    %1195 = vmatpush1.msra.mxu0 0.0
    %1196 = vmatprep.subr.mxu0 0.0
    %1197 = vmatpush1.msra.mxu0 0.0
    %1198 = vmatprep.subr.mxu0 0.0
    %1199 = vmatpush1.msra.mxu0 0.0
    %1200 = vmatprep.subr.mxu0 0.0
    %1201 = vmatpush1.msra.mxu0 0.0
    %1202 = vmatprep.subr.mxu0 0.0
    %1203 = vmatpush1.msra.mxu0 0.0
    %1204 = vmatprep.subr.mxu0 0.0
    %1205 = vmatpush1.msra.mxu0 0.0
    %1206 = vmatprep.subr.mxu0 0.0
    %1207 = vmatpush1.msra.mxu0 0.0
    %1208 = vmatprep.subr.mxu0 0.0
    %1209 = vmatpush1.msra.mxu0 0.0
    %1210 = vmatprep.mubr.f32.mxu0 0.0
    %1211 = vmatmul.mubr.f32.gmra.mrb[0].mxu0 %v1071
    %v1212 = vpop.f32.mrb[0].mxu0
    %v1213 = vadd.f32 0.0, %v1212
    %v1214 = vpop.f32.mrb[0].mxu0
    %1215 = vdwg.mxu0
    %v1216 = vadd.f32 %v1072, %v1142
    %v1217 = vadd.f32 %v1073, %v1144
    %v1218 = vmul.f32 %v1216, 0.5
    %v1219 = vmul.f32 %v1217, 0.5
    %v1220 = vtanh.pop %v1218
    %v1221 = vtanh.pop %v1219
    %v1222 = vmul.f32 %v1220, 0.5
    %v1223 = vmul.f32 %v1221, 0.5
    %v1224 = vadd.f32 %v1222, 0.5
    %v1225 = vadd.f32 %v1223, 0.5
    %v1226 = vadd.f32 %v1213, %v378
    %v1227 = vmul.f32 %v1224, %v1226
    %v1228 = vadd.f32 %v1074, %v1227
    %v1229 = vtanh.pop %v1228
    %v1230 = vsub.f32 %v1071, %v1229
    %v1231 = vmul.f32 %v1225, %v1230
    %v1232 = vadd.f32 %v1229, %v1231
    %v1233 = vld [vmem:[#allocation2 + $0x78] sm:$0xff]
    %v1234 = vld [vmem:[#allocation2 + $0x80] sm:$0xff]
    %v1235 = vld [vmem:[#allocation2 + $0x88] sm:$0xff]
    %1236 = vmatprep.subr.mxu0 %v384
    %1237 = vmatpush1.msra.mxu0 %v383
    %1238 = vmatprep.subr.mxu0 %v387
    %1239 = vmatpush1.msra.mxu0 %v386
    %1240 = vmatprep.subr.mxu0 %v390
    %1241 = vmatpush1.msra.mxu0 %v389
    %1242 = vmatprep.subr.mxu0 %v393
    %1243 = vmatpush1.msra.mxu0 %v392
    %1244 = vmatprep.subr.mxu0 %v396
    %1245 = vmatpush1.msra.mxu0 %v395
    %1246 = vmatprep.subr.mxu0 %v399
    %1247 = vmatpush1.msra.mxu0 %v398
    %1248 = vmatprep.subr.mxu0 %v402
    %1249 = vmatpush1.msra.mxu0 %v401
    %1250 = vmatprep.subr.mxu0 %v405
    %1251 = vmatpush1.msra.mxu0 %v404
    %1252 = vmatprep.subr.mxu0 %v408
    %1253 = vmatpush1.msra.mxu0 %v407
    %1254 = vmatprep.subr.mxu0 %v411
    %1255 = vmatpush1.msra.mxu0 %v410
    %1256 = vmatprep.subr.mxu0 %v414
    %1257 = vmatpush1.msra.mxu0 %v413
    %1258 = vmatprep.subr.mxu0 %v417
    %1259 = vmatpush1.msra.mxu0 %v416
    %1260 = vmatprep.subr.mxu0 %v420
    %1261 = vmatpush1.msra.mxu0 %v419
    %1262 = vmatprep.subr.mxu0 %v423
    %1263 = vmatpush1.msra.mxu0 %v422
    %1264 = vmatprep.subr.mxu0 %v426
    %1265 = vmatpush1.msra.mxu0 %v425
    %1266 = vmatprep.subr.mxu0 %v429
    %1267 = vmatpush1.msra.mxu0 %v428
    %1268 = vmatprep.subr.mxu0 0.0
    %1269 = vmatpush1.msra.mxu0 0.0
    %1270 = vmatprep.subr.mxu0 0.0
    %1271 = vmatpush1.msra.mxu0 0.0
    %1272 = vmatprep.subr.mxu0 0.0
    %1273 = vmatpush1.msra.mxu0 0.0
    %1274 = vmatprep.subr.mxu0 0.0
    %1275 = vmatpush1.msra.mxu0 0.0
    %1276 = vmatprep.subr.mxu0 0.0
    %1277 = vmatpush1.msra.mxu0 0.0
    %1278 = vmatprep.subr.mxu0 0.0
    %1279 = vmatpush1.msra.mxu0 0.0
    %1280 = vmatprep.subr.mxu0 0.0
    %1281 = vmatpush1.msra.mxu0 0.0
    %1282 = vmatprep.subr.mxu0 0.0
    %1283 = vmatpush1.msra.mxu0 0.0
    %1284 = vmatprep.subr.mxu0 0.0
    %1285 = vmatpush1.msra.mxu0 0.0
    %1286 = vmatprep.subr.mxu0 0.0
    %1287 = vmatpush1.msra.mxu0 0.0
    %1288 = vmatprep.subr.mxu0 0.0
    %1289 = vmatpush1.msra.mxu0 0.0
    %1290 = vmatprep.subr.mxu0 0.0
    %1291 = vmatpush1.msra.mxu0 0.0
    %1292 = vmatprep.subr.mxu0 0.0
    %1293 = vmatpush1.msra.mxu0 0.0
    %1294 = vmatprep.subr.mxu0 0.0
    %1295 = vmatpush1.msra.mxu0 0.0
    %1296 = vmatprep.subr.mxu0 0.0
    %1297 = vmatpush1.msra.mxu0 0.0
    %1298 = vmatprep.subr.mxu0 0.0
    %1299 = vmatpush1.msra.mxu0 0.0
    %1300 = vmatprep.mubr.f32.mxu0 0.0
    %1301 = vmatmul.mubr.f32.gmra.mrb[0].mxu0 %v1232
    %v1302 = vpop.f32.mrb[0].mxu0
    %v1303 = vadd.f32 0.0, %v1302
    %v1304 = vpop.f32.mrb[0].mxu0
    %v1305 = vadd.f32 0.0, %v1304
    %1306 = vdwg.mxu0
    %1307 = vmatprep.subr.mxu0 0.0
    %1308 = vmatpush1.msra.mxu0 %v385
    %1309 = vmatprep.subr.mxu0 0.0
    %1310 = vmatpush1.msra.mxu0 %v388
    %1311 = vmatprep.subr.mxu0 0.0
    %1312 = vmatpush1.msra.mxu0 %v391
    %1313 = vmatprep.subr.mxu0 0.0
    %1314 = vmatpush1.msra.mxu0 %v394
    %1315 = vmatprep.subr.mxu0 0.0
    %1316 = vmatpush1.msra.mxu0 %v397
    %1317 = vmatprep.subr.mxu0 0.0
    %1318 = vmatpush1.msra.mxu0 %v400
    %1319 = vmatprep.subr.mxu0 0.0
    %1320 = vmatpush1.msra.mxu0 %v403
    %1321 = vmatprep.subr.mxu0 0.0
    %1322 = vmatpush1.msra.mxu0 %v406
    %1323 = vmatprep.subr.mxu0 0.0
    %1324 = vmatpush1.msra.mxu0 %v409
    %1325 = vmatprep.subr.mxu0 0.0
    %1326 = vmatpush1.msra.mxu0 %v412
    %1327 = vmatprep.subr.mxu0 0.0
    %1328 = vmatpush1.msra.mxu0 %v415
    %1329 = vmatprep.subr.mxu0 0.0
    %1330 = vmatpush1.msra.mxu0 %v418
    %1331 = vmatprep.subr.mxu0 0.0
    %1332 = vmatpush1.msra.mxu0 %v421
    %1333 = vmatprep.subr.mxu0 0.0
    %1334 = vmatpush1.msra.mxu0 %v424
    %1335 = vmatprep.subr.mxu0 0.0
    %1336 = vmatpush1.msra.mxu0 %v427
    %1337 = vmatprep.subr.mxu0 0.0
    %1338 = vmatpush1.msra.mxu0 %v430
    %1339 = vmatprep.subr.mxu0 0.0
    %1340 = vmatpush1.msra.mxu0 0.0
    %1341 = vmatprep.subr.mxu0 0.0
    %1342 = vmatpush1.msra.mxu0 0.0
    %1343 = vmatprep.subr.mxu0 0.0
    %1344 = vmatpush1.msra.mxu0 0.0
    %1345 = vmatprep.subr.mxu0 0.0
    %1346 = vmatpush1.msra.mxu0 0.0
    %1347 = vmatprep.subr.mxu0 0.0
    %1348 = vmatpush1.msra.mxu0 0.0
    %1349 = vmatprep.subr.mxu0 0.0
    %1350 = vmatpush1.msra.mxu0 0.0
    %1351 = vmatprep.subr.mxu0 0.0
    %1352 = vmatpush1.msra.mxu0 0.0
    %1353 = vmatprep.subr.mxu0 0.0
    %1354 = vmatpush1.msra.mxu0 0.0
    %1355 = vmatprep.subr.mxu0 0.0
    %1356 = vmatpush1.msra.mxu0 0.0
    %1357 = vmatprep.subr.mxu0 0.0
    %1358 = vmatpush1.msra.mxu0 0.0
    %1359 = vmatprep.subr.mxu0 0.0
    %1360 = vmatpush1.msra.mxu0 0.0
    %1361 = vmatprep.subr.mxu0 0.0
    %1362 = vmatpush1.msra.mxu0 0.0
    %1363 = vmatprep.subr.mxu0 0.0
    %1364 = vmatpush1.msra.mxu0 0.0
    %1365 = vmatprep.subr.mxu0 0.0
    %1366 = vmatpush1.msra.mxu0 0.0
    %1367 = vmatprep.subr.mxu0 0.0
    %1368 = vmatpush1.msra.mxu0 0.0
    %1369 = vmatprep.subr.mxu0 0.0
    %1370 = vmatpush1.msra.mxu0 0.0
    %1371 = vmatprep.mubr.f32.mxu0 0.0
    %1372 = vmatmul.mubr.f32.gmra.mrb[0].mxu0 %v1232
    %v1373 = vpop.f32.mrb[0].mxu0
    %v1374 = vadd.f32 0.0, %v1373
    %v1375 = vpop.f32.mrb[0].mxu0
    %1376 = vdwg.mxu0
    %v1377 = vadd.f32 %v1233, %v1303
    %v1378 = vadd.f32 %v1234, %v1305
    %v1379 = vmul.f32 %v1377, 0.5
    %v1380 = vmul.f32 %v1378, 0.5
    %v1381 = vtanh.pop %v1379
    %v1382 = vtanh.pop %v1380
    %v1383 = vmul.f32 %v1381, 0.5
    %v1384 = vmul.f32 %v1382, 0.5
    %v1385 = vadd.f32 %v1383, 0.5
    %v1386 = vadd.f32 %v1384, 0.5
    %v1387 = vadd.f32 %v1374, %v378
    %v1388 = vmul.f32 %v1385, %v1387
    %v1389 = vadd.f32 %v1235, %v1388
    %v1390 = vtanh.pop %v1389
    %v1391 = vsub.f32 %v1232, %v1390
    %v1392 = vmul.f32 %v1386, %v1391
    %v1393 = vadd.f32 %v1390, %v1392
    %v1394 = vld [vmem:[#allocation2 + $0x90] sm:$0xff]
    %v1395 = vld [vmem:[#allocation2 + $0x98] sm:$0xff]
    %v1396 = vld [vmem:[#allocation2 + $0xa0] sm:$0xff]
    %1397 = vmatprep.subr.mxu0 %v384
    %1398 = vmatpush1.msra.mxu0 %v383
    %1399 = vmatprep.subr.mxu0 %v387
    %1400 = vmatpush1.msra.mxu0 %v386
    %1401 = vmatprep.subr.mxu0 %v390
    %1402 = vmatpush1.msra.mxu0 %v389
    %1403 = vmatprep.subr.mxu0 %v393
    %1404 = vmatpush1.msra.mxu0 %v392
    %1405 = vmatprep.subr.mxu0 %v396
    %1406 = vmatpush1.msra.mxu0 %v395
    %1407 = vmatprep.subr.mxu0 %v399
    %1408 = vmatpush1.msra.mxu0 %v398
    %1409 = vmatprep.subr.mxu0 %v402
    %1410 = vmatpush1.msra.mxu0 %v401
    %1411 = vmatprep.subr.mxu0 %v405
    %1412 = vmatpush1.msra.mxu0 %v404
    %1413 = vmatprep.subr.mxu0 %v408
    %1414 = vmatpush1.msra.mxu0 %v407
    %1415 = vmatprep.subr.mxu0 %v411
    %1416 = vmatpush1.msra.mxu0 %v410
    %1417 = vmatprep.subr.mxu0 %v414
    %1418 = vmatpush1.msra.mxu0 %v413
    %1419 = vmatprep.subr.mxu0 %v417
    %1420 = vmatpush1.msra.mxu0 %v416
    %1421 = vmatprep.subr.mxu0 %v420
    %1422 = vmatpush1.msra.mxu0 %v419
    %1423 = vmatprep.subr.mxu0 %v423
    %1424 = vmatpush1.msra.mxu0 %v422
    %1425 = vmatprep.subr.mxu0 %v426
    %1426 = vmatpush1.msra.mxu0 %v425
    %1427 = vmatprep.subr.mxu0 %v429
    %1428 = vmatpush1.msra.mxu0 %v428
    %1429 = vmatprep.subr.mxu0 0.0
    %1430 = vmatpush1.msra.mxu0 0.0
    %1431 = vmatprep.subr.mxu0 0.0
    %1432 = vmatpush1.msra.mxu0 0.0
    %1433 = vmatprep.subr.mxu0 0.0
    %1434 = vmatpush1.msra.mxu0 0.0
    %1435 = vmatprep.subr.mxu0 0.0
    %1436 = vmatpush1.msra.mxu0 0.0
    %1437 = vmatprep.subr.mxu0 0.0
    %1438 = vmatpush1.msra.mxu0 0.0
    %1439 = vmatprep.subr.mxu0 0.0
    %1440 = vmatpush1.msra.mxu0 0.0
    %1441 = vmatprep.subr.mxu0 0.0
    %1442 = vmatpush1.msra.mxu0 0.0
    %1443 = vmatprep.subr.mxu0 0.0
    %1444 = vmatpush1.msra.mxu0 0.0
    %1445 = vmatprep.subr.mxu0 0.0
    %1446 = vmatpush1.msra.mxu0 0.0
    %1447 = vmatprep.subr.mxu0 0.0
    %1448 = vmatpush1.msra.mxu0 0.0
    %1449 = vmatprep.subr.mxu0 0.0
    %1450 = vmatpush1.msra.mxu0 0.0
    %1451 = vmatprep.subr.mxu0 0.0
    %1452 = vmatpush1.msra.mxu0 0.0
    %1453 = vmatprep.subr.mxu0 0.0
    %1454 = vmatpush1.msra.mxu0 0.0
    %1455 = vmatprep.subr.mxu0 0.0
    %1456 = vmatpush1.msra.mxu0 0.0
    %1457 = vmatprep.subr.mxu0 0.0
    %1458 = vmatpush1.msra.mxu0 0.0
    %1459 = vmatprep.subr.mxu0 0.0
    %1460 = vmatpush1.msra.mxu0 0.0
    %1461 = vmatprep.mubr.f32.mxu0 0.0
    %1462 = vmatmul.mubr.f32.gmra.mrb[0].mxu0 %v1393
    %v1463 = vpop.f32.mrb[0].mxu0
    %v1464 = vadd.f32 0.0, %v1463
    %v1465 = vpop.f32.mrb[0].mxu0
    %v1466 = vadd.f32 0.0, %v1465
    %1467 = vdwg.mxu0
    %1468 = vmatprep.subr.mxu0 0.0
    %1469 = vmatpush1.msra.mxu0 %v385
    %1470 = vmatprep.subr.mxu0 0.0
    %1471 = vmatpush1.msra.mxu0 %v388
    %1472 = vmatprep.subr.mxu0 0.0
    %1473 = vmatpush1.msra.mxu0 %v391
    %1474 = vmatprep.subr.mxu0 0.0
    %1475 = vmatpush1.msra.mxu0 %v394
    %1476 = vmatprep.subr.mxu0 0.0
    %1477 = vmatpush1.msra.mxu0 %v397
    %1478 = vmatprep.subr.mxu0 0.0
    %1479 = vmatpush1.msra.mxu0 %v400
    %1480 = vmatprep.subr.mxu0 0.0
    %1481 = vmatpush1.msra.mxu0 %v403
    %1482 = vmatprep.subr.mxu0 0.0
    %1483 = vmatpush1.msra.mxu0 %v406
    %1484 = vmatprep.subr.mxu0 0.0
    %1485 = vmatpush1.msra.mxu0 %v409
    %1486 = vmatprep.subr.mxu0 0.0
    %1487 = vmatpush1.msra.mxu0 %v412
    %1488 = vmatprep.subr.mxu0 0.0
    %1489 = vmatpush1.msra.mxu0 %v415
    %1490 = vmatprep.subr.mxu0 0.0
    %1491 = vmatpush1.msra.mxu0 %v418
    %1492 = vmatprep.subr.mxu0 0.0
    %1493 = vmatpush1.msra.mxu0 %v421
    %1494 = vmatprep.subr.mxu0 0.0
    %1495 = vmatpush1.msra.mxu0 %v424
    %1496 = vmatprep.subr.mxu0 0.0
    %1497 = vmatpush1.msra.mxu0 %v427
    %1498 = vmatprep.subr.mxu0 0.0
    %1499 = vmatpush1.msra.mxu0 %v430
    %1500 = vmatprep.subr.mxu0 0.0
    %1501 = vmatpush1.msra.mxu0 0.0
    %1502 = vmatprep.subr.mxu0 0.0
    %1503 = vmatpush1.msra.mxu0 0.0
    %1504 = vmatprep.subr.mxu0 0.0
    %1505 = vmatpush1.msra.mxu0 0.0
    %1506 = vmatprep.subr.mxu0 0.0
    %1507 = vmatpush1.msra.mxu0 0.0
    %1508 = vmatprep.subr.mxu0 0.0
    %1509 = vmatpush1.msra.mxu0 0.0
    %1510 = vmatprep.subr.mxu0 0.0
    %1511 = vmatpush1.msra.mxu0 0.0
    %1512 = vmatprep.subr.mxu0 0.0
    %1513 = vmatpush1.msra.mxu0 0.0
    %1514 = vmatprep.subr.mxu0 0.0
    %1515 = vmatpush1.msra.mxu0 0.0
    %1516 = vmatprep.subr.mxu0 0.0
    %1517 = vmatpush1.msra.mxu0 0.0
    %1518 = vmatprep.subr.mxu0 0.0
    %1519 = vmatpush1.msra.mxu0 0.0
    %1520 = vmatprep.subr.mxu0 0.0
    %1521 = vmatpush1.msra.mxu0 0.0
    %1522 = vmatprep.subr.mxu0 0.0
    %1523 = vmatpush1.msra.mxu0 0.0
    %1524 = vmatprep.subr.mxu0 0.0
    %1525 = vmatpush1.msra.mxu0 0.0
    %1526 = vmatprep.subr.mxu0 0.0
    %1527 = vmatpush1.msra.mxu0 0.0
    %1528 = vmatprep.subr.mxu0 0.0
    %1529 = vmatpush1.msra.mxu0 0.0
    %1530 = vmatprep.subr.mxu0 0.0
    %1531 = vmatpush1.msra.mxu0 0.0
    %1532 = vmatprep.mubr.f32.mxu0 0.0
    %1533 = vmatmul.mubr.f32.gmra.mrb[0].mxu0 %v1393
    %v1534 = vpop.f32.mrb[0].mxu0
    %v1535 = vadd.f32 0.0, %v1534
    %v1536 = vpop.f32.mrb[0].mxu0
    %1537 = vdwg.mxu0
    %v1538 = vadd.f32 %v1394, %v1464
    %v1539 = vadd.f32 %v1395, %v1466
    %v1540 = vmul.f32 %v1538, 0.5
    %v1541 = vmul.f32 %v1539, 0.5
    %v1542 = vtanh.pop %v1540
    %v1543 = vtanh.pop %v1541
    %v1544 = vmul.f32 %v1542, 0.5
    %v1545 = vmul.f32 %v1543, 0.5
    %v1546 = vadd.f32 %v1544, 0.5
    %v1547 = vadd.f32 %v1545, 0.5
    %v1548 = vadd.f32 %v1535, %v378
    %v1549 = vmul.f32 %v1546, %v1548
    %v1550 = vadd.f32 %v1396, %v1549
    %v1551 = vtanh.pop %v1550
    %v1552 = vsub.f32 %v1393, %v1551
    %v1553 = vmul.f32 %v1547, %v1552
    %v1554 = vadd.f32 %v1551, %v1553
    %v1555 = vld [vmem:[#allocation2 + $0xa8] sm:$0xff]
    %v1556 = vld [vmem:[#allocation2 + $0xb0] sm:$0xff]
    %v1557 = vld [vmem:[#allocation2 + $0xb8] sm:$0xff]
    %1558 = vmatprep.subr.mxu0 %v384
    %1559 = vmatpush1.msra.mxu0 %v383
    %1560 = vmatprep.subr.mxu0 %v387
    %1561 = vmatpush1.msra.mxu0 %v386
    %1562 = vmatprep.subr.mxu0 %v390
    %1563 = vmatpush1.msra.mxu0 %v389
    %1564 = vmatprep.subr.mxu0 %v393
    %1565 = vmatpush1.msra.mxu0 %v392
    %1566 = vmatprep.subr.mxu0 %v396
    %1567 = vmatpush1.msra.mxu0 %v395
    %1568 = vmatprep.subr.mxu0 %v399
    %1569 = vmatpush1.msra.mxu0 %v398
    %1570 = vmatprep.subr.mxu0 %v402
    %1571 = vmatpush1.msra.mxu0 %v401
    %1572 = vmatprep.subr.mxu0 %v405
    %1573 = vmatpush1.msra.mxu0 %v404
    %1574 = vmatprep.subr.mxu0 %v408
    %1575 = vmatpush1.msra.mxu0 %v407
    %1576 = vmatprep.subr.mxu0 %v411
    %1577 = vmatpush1.msra.mxu0 %v410
    %1578 = vmatprep.subr.mxu0 %v414
    %1579 = vmatpush1.msra.mxu0 %v413
    %1580 = vmatprep.subr.mxu0 %v417
    %1581 = vmatpush1.msra.mxu0 %v416
    %1582 = vmatprep.subr.mxu0 %v420
    %1583 = vmatpush1.msra.mxu0 %v419
    %1584 = vmatprep.subr.mxu0 %v423
    %1585 = vmatpush1.msra.mxu0 %v422
    %1586 = vmatprep.subr.mxu0 %v426
    %1587 = vmatpush1.msra.mxu0 %v425
    %1588 = vmatprep.subr.mxu0 %v429
    %1589 = vmatpush1.msra.mxu0 %v428
    %1590 = vmatprep.subr.mxu0 0.0
    %1591 = vmatpush1.msra.mxu0 0.0
    %1592 = vmatprep.subr.mxu0 0.0
    %1593 = vmatpush1.msra.mxu0 0.0
    %1594 = vmatprep.subr.mxu0 0.0
    %1595 = vmatpush1.msra.mxu0 0.0
    %1596 = vmatprep.subr.mxu0 0.0
    %1597 = vmatpush1.msra.mxu0 0.0
    %1598 = vmatprep.subr.mxu0 0.0
    %1599 = vmatpush1.msra.mxu0 0.0
    %1600 = vmatprep.subr.mxu0 0.0
    %1601 = vmatpush1.msra.mxu0 0.0
    %1602 = vmatprep.subr.mxu0 0.0
    %1603 = vmatpush1.msra.mxu0 0.0
    %1604 = vmatprep.subr.mxu0 0.0
    %1605 = vmatpush1.msra.mxu0 0.0
    %1606 = vmatprep.subr.mxu0 0.0
    %1607 = vmatpush1.msra.mxu0 0.0
    %1608 = vmatprep.subr.mxu0 0.0
    %1609 = vmatpush1.msra.mxu0 0.0
    %1610 = vmatprep.subr.mxu0 0.0
    %1611 = vmatpush1.msra.mxu0 0.0
    %1612 = vmatprep.subr.mxu0 0.0
    %1613 = vmatpush1.msra.mxu0 0.0
    %1614 = vmatprep.subr.mxu0 0.0
    %1615 = vmatpush1.msra.mxu0 0.0
    %1616 = vmatprep.subr.mxu0 0.0
    %1617 = vmatpush1.msra.mxu0 0.0
    %1618 = vmatprep.subr.mxu0 0.0
    %1619 = vmatpush1.msra.mxu0 0.0
    %1620 = vmatprep.subr.mxu0 0.0
    %1621 = vmatpush1.msra.mxu0 0.0
    %1622 = vmatprep.mubr.f32.mxu0 0.0
    %1623 = vmatmul.mubr.f32.gmra.mrb[0].mxu0 %v1554
    %v1624 = vpop.f32.mrb[0].mxu0
    %v1625 = vadd.f32 0.0, %v1624
    %v1626 = vpop.f32.mrb[0].mxu0
    %v1627 = vadd.f32 0.0, %v1626
    %1628 = vdwg.mxu0
    %1629 = vmatprep.subr.mxu0 0.0
    %1630 = vmatpush1.msra.mxu0 %v385
    %1631 = vmatprep.subr.mxu0 0.0
    %1632 = vmatpush1.msra.mxu0 %v388
    %1633 = vmatprep.subr.mxu0 0.0
    %1634 = vmatpush1.msra.mxu0 %v391
    %1635 = vmatprep.subr.mxu0 0.0
    %1636 = vmatpush1.msra.mxu0 %v394
    %1637 = vmatprep.subr.mxu0 0.0
    %1638 = vmatpush1.msra.mxu0 %v397
    %1639 = vmatprep.subr.mxu0 0.0
    %1640 = vmatpush1.msra.mxu0 %v400
    %1641 = vmatprep.subr.mxu0 0.0
    %1642 = vmatpush1.msra.mxu0 %v403
    %1643 = vmatprep.subr.mxu0 0.0
    %1644 = vmatpush1.msra.mxu0 %v406
    %1645 = vmatprep.subr.mxu0 0.0
    %1646 = vmatpush1.msra.mxu0 %v409
    %1647 = vmatprep.subr.mxu0 0.0
    %1648 = vmatpush1.msra.mxu0 %v412
    %1649 = vmatprep.subr.mxu0 0.0
    %1650 = vmatpush1.msra.mxu0 %v415
    %1651 = vmatprep.subr.mxu0 0.0
    %1652 = vmatpush1.msra.mxu0 %v418
    %1653 = vmatprep.subr.mxu0 0.0
    %1654 = vmatpush1.msra.mxu0 %v421
    %1655 = vmatprep.subr.mxu0 0.0
    %1656 = vmatpush1.msra.mxu0 %v424
    %1657 = vmatprep.subr.mxu0 0.0
    %1658 = vmatpush1.msra.mxu0 %v427
    %1659 = vmatprep.subr.mxu0 0.0
    %1660 = vmatpush1.msra.mxu0 %v430
    %1661 = vmatprep.subr.mxu0 0.0
    %1662 = vmatpush1.msra.mxu0 0.0
    %1663 = vmatprep.subr.mxu0 0.0
    %1664 = vmatpush1.msra.mxu0 0.0
    %1665 = vmatprep.subr.mxu0 0.0
    %1666 = vmatpush1.msra.mxu0 0.0
    %1667 = vmatprep.subr.mxu0 0.0
    %1668 = vmatpush1.msra.mxu0 0.0
    %1669 = vmatprep.subr.mxu0 0.0
    %1670 = vmatpush1.msra.mxu0 0.0
    %1671 = vmatprep.subr.mxu0 0.0
    %1672 = vmatpush1.msra.mxu0 0.0
    %1673 = vmatprep.subr.mxu0 0.0
    %1674 = vmatpush1.msra.mxu0 0.0
    %1675 = vmatprep.subr.mxu0 0.0
    %1676 = vmatpush1.msra.mxu0 0.0
    %1677 = vmatprep.subr.mxu0 0.0
    %1678 = vmatpush1.msra.mxu0 0.0
    %1679 = vmatprep.subr.mxu0 0.0
    %1680 = vmatpush1.msra.mxu0 0.0
    %1681 = vmatprep.subr.mxu0 0.0
    %1682 = vmatpush1.msra.mxu0 0.0
    %1683 = vmatprep.subr.mxu0 0.0
    %1684 = vmatpush1.msra.mxu0 0.0
    %1685 = vmatprep.subr.mxu0 0.0
    %1686 = vmatpush1.msra.mxu0 0.0
    %1687 = vmatprep.subr.mxu0 0.0
    %1688 = vmatpush1.msra.mxu0 0.0
    %1689 = vmatprep.subr.mxu0 0.0
    %1690 = vmatpush1.msra.mxu0 0.0
    %1691 = vmatprep.subr.mxu0 0.0
    %1692 = vmatpush1.msra.mxu0 0.0
    %1693 = vmatprep.mubr.f32.mxu0 0.0
    %1694 = vmatmul.mubr.f32.gmra.mrb[0].mxu0 %v1554
    %v1695 = vpop.f32.mrb[0].mxu0
    %v1696 = vadd.f32 0.0, %v1695
    %v1697 = vpop.f32.mrb[0].mxu0
    %1698 = vdwg.mxu0
    %v1699 = vadd.f32 %v1555, %v1625
    %v1700 = vadd.f32 %v1556, %v1627
    %v1701 = vmul.f32 %v1699, 0.5
    %v1702 = vmul.f32 %v1700, 0.5
    %v1703 = vtanh.pop %v1701
    %v1704 = vtanh.pop %v1702
    %v1705 = vmul.f32 %v1703, 0.5
    %v1706 = vmul.f32 %v1704, 0.5
    %v1707 = vadd.f32 %v1705, 0.5
    %v1708 = vadd.f32 %v1706, 0.5
    %v1709 = vadd.f32 %v1696, %v378
    %v1710 = vmul.f32 %v1707, %v1709
    %v1711 = vadd.f32 %v1557, %v1710
    %v1712 = vtanh.pop %v1711
    %v1713 = vsub.f32 %v1554, %v1712
    %v1714 = vmul.f32 %v1708, %v1713
    %v1715 = vadd.f32 %v1712, %v1714
    %v1716 = vld [vmem:[%s5] sm:$0xff]
    %v1717 = vld [vmem:[%s5 + $0x8] sm:$0xff]
    %v1718 = vld [vmem:[%s5 + $0x10] sm:$0xff]
    %v1719 = vld [vmem:[%s5 + $0x18] sm:$0xff]
    %v1720 = vld [vmem:[%s5 + $0x20] sm:$0xff]
    %v1721 = vld [vmem:[%s5 + $0x28] sm:$0xff]
    %v1722 = vld [vmem:[%s5 + $0x30] sm:$0xff]
    %v1723 = vld [vmem:[%s5 + $0x38] sm:$0xff]
    %v1724 = vld [vmem:[%s5 + $0x40] sm:$0xff]
    %v1725 = vld [vmem:[%s5 + $0x48] sm:$0xff]
    %v1726 = vld [vmem:[%s5 + $0x50] sm:$0xff]
    %v1727 = vld [vmem:[%s5 + $0x58] sm:$0xff]
    %v1728 = vld [vmem:[%s5 + $0x60] sm:$0xff]
    %v1729 = vld [vmem:[%s5 + $0x68] sm:$0xff]
    %v1730 = vld [vmem:[%s5 + $0x70] sm:$0xff]
    %v1731 = vld [vmem:[%s5 + $0x78] sm:$0xff]
    %v1732 = vld [vmem:[%s6] sm:$0x1]
    %v1734 = vlaneseq
    %v1735 = vshrl.u32 %v1734, 7
    %v1736 = vsub.s32 0, %v1735
    %v1737 = vrot.slane %v1732, %v1736
    %1739 = vmatprep.subr.mxu0 0.0
    %1740 = vmatpush1.msra.mxu0 %v1716
    %1741 = vmatprep.subr.mxu0 0.0
    %1742 = vmatpush1.msra.mxu0 %v1717
    %1743 = vmatprep.subr.mxu0 0.0
    %1744 = vmatpush1.msra.mxu0 %v1718
    %1745 = vmatprep.subr.mxu0 0.0
    %1746 = vmatpush1.msra.mxu0 %v1719
    %1747 = vmatprep.subr.mxu0 0.0
    %1748 = vmatpush1.msra.mxu0 %v1720
    %1749 = vmatprep.subr.mxu0 0.0
    %1750 = vmatpush1.msra.mxu0 %v1721
    %1751 = vmatprep.subr.mxu0 0.0
    %1752 = vmatpush1.msra.mxu0 %v1722
    %1753 = vmatprep.subr.mxu0 0.0
    %1754 = vmatpush1.msra.mxu0 %v1723
    %1755 = vmatprep.subr.mxu0 0.0
    %1756 = vmatpush1.msra.mxu0 %v1724
    %1757 = vmatprep.subr.mxu0 0.0
    %1758 = vmatpush1.msra.mxu0 %v1725
    %1759 = vmatprep.subr.mxu0 0.0
    %1760 = vmatpush1.msra.mxu0 %v1726
    %1761 = vmatprep.subr.mxu0 0.0
    %1762 = vmatpush1.msra.mxu0 %v1727
    %1763 = vmatprep.subr.mxu0 0.0
    %1764 = vmatpush1.msra.mxu0 %v1728
    %1765 = vmatprep.subr.mxu0 0.0
    %1766 = vmatpush1.msra.mxu0 %v1729
    %1767 = vmatprep.subr.mxu0 0.0
    %1768 = vmatpush1.msra.mxu0 %v1730
    %1769 = vmatprep.subr.mxu0 0.0
    %1770 = vmatpush1.msra.mxu0 %v1731
    %1771 = vmatprep.subr.mxu0 0.0
    %1772 = vmatpush1.msra.mxu0 0.0
    %1773 = vmatprep.subr.mxu0 0.0
    %1774 = vmatpush1.msra.mxu0 0.0
    %1775 = vmatprep.subr.mxu0 0.0
    %1776 = vmatpush1.msra.mxu0 0.0
    %1777 = vmatprep.subr.mxu0 0.0
    %1778 = vmatpush1.msra.mxu0 0.0
    %1779 = vmatprep.subr.mxu0 0.0
    %1780 = vmatpush1.msra.mxu0 0.0
    %1781 = vmatprep.subr.mxu0 0.0
    %1782 = vmatpush1.msra.mxu0 0.0
    %1783 = vmatprep.subr.mxu0 0.0
    %1784 = vmatpush1.msra.mxu0 0.0
    %1785 = vmatprep.subr.mxu0 0.0
    %1786 = vmatpush1.msra.mxu0 0.0
    %1787 = vmatprep.subr.mxu0 0.0
    %1788 = vmatpush1.msra.mxu0 0.0
    %1789 = vmatprep.subr.mxu0 0.0
    %1790 = vmatpush1.msra.mxu0 0.0
    %1791 = vmatprep.subr.mxu0 0.0
    %1792 = vmatpush1.msra.mxu0 0.0
    %1793 = vmatprep.subr.mxu0 0.0
    %1794 = vmatpush1.msra.mxu0 0.0
    %1795 = vmatprep.subr.mxu0 0.0
    %1796 = vmatpush1.msra.mxu0 0.0
    %1797 = vmatprep.subr.mxu0 0.0
    %1798 = vmatpush1.msra.mxu0 0.0
    %1799 = vmatprep.subr.mxu0 0.0
    %1800 = vmatpush1.msra.mxu0 0.0
    %1801 = vmatprep.subr.mxu0 0.0
    %1802 = vmatpush1.msra.mxu0 0.0
    %1803 = vmatprep.mubr.f32.mxu0 0.0
    %1804 = vmatmul.mubr.f32.gmra.mrb[0].mxu0 %v1715
    %v1805 = vpop.f32.mrb[0].mxu0
    %v1806 = vadd.f32 %v1737, %v1805
    %v1807 = vpop.f32.mrb[0].mxu0
    %1808 = vdwg.mxu0
    %1809 = vst [vmem:[%s7] sm:$0xff] %v1806
    // Predicated region
    $region42: #{gru_net_forward.1} parent=1 // pred_check
      _
    $region43: #{gru_net_forward.1} parent=1 // pred_check_branch
      %1811 = sbr.rel (0) target = $region45
    $region44: #{gru_net_forward.1} parent=1 // pred_region
      _
    $region45: #{gru_net_forward.1} parent=1 // pred_fallthru
      _
    // Predicated region
    $region46: #{gru_net_forward.1} parent=1 // pred_check
      _
    $region47: #{gru_net_forward.1} parent=1 // pred_check_branch
      %1813 = sbr.rel (0) target = $region49
    $region48: #{gru_net_forward.1} parent=1 // pred_region
      _
    $region49: #{gru_net_forward.1} parent=1 // pred_fallthru
      _
    %1814 = vsyncpa [#allocation4], 1
    %1815 = vsyncpa [#allocation6], 1

</llo_original>
